<compile_context>
chip_gen: v6e
topology: v6e:2x2x1
jax: 0.10.0
libtpu: 0.0.40
codegen_flags: <defaults>
</compile_context>

<pallas_src>
import jax
import jax.numpy as jnp
from jax.experimental import pallas as pl
from jax.experimental.pallas import tpu as pltpu

B, C, H, W = 2, 4, 16, 16          # batch, in-channels, spatial (NCHW like PyTorch)
KH = KW = 3                        # feature_extractor conv kernel
COUT = 4                           # feature_extractor output channels
N_CLASSES = 2
HW = H * W
IN_FEATURES = COUT * H * W         # n_channels * height * width = 1024
OUT_FEATURES = IN_FEATURES // 2    # 512


# ---------------- fused Pallas kernel ----------------

def cnn_fused_kernel(x_ref, wc_ref, bc_ref, mask_ref, w1_hbm_ref, s1_ref, b1_ref,
                     w2_ref, b2_ref, o_ref, w1_vmem, w1_sem):
    # x_ref   : (B*C, H*W)            f32   input images, spatial dims flattened onto lanes
    # wc_ref  : (COUT*B, 9*B*C)       f32   block-diagonal (over batch) conv weight
    # bc_ref  : (COUT*B, 1)           f32   conv bias replicated per batch row
    # mask_ref: (9, H*W)              f32   precomputed "same"-padding validity masks
    # w1_hbm  : (COUT, H*W, OUT)      int8  fc weight (HBM; fetched manually, overlapped)
    # s1_ref  : (1, OUT)              f32   per-output-column dequant scale for w1
    # b1_ref  : (1, OUT)              f32
    # w2_ref  : (N_CLASSES, OUT)      f32   predictor weight (PyTorch (out,in) layout)
    # b2_ref  : (1, N_CLASSES)        f32
    # o_ref   : (B, N_CLASSES)        f32   softmax probabilities
    # w1_vmem : VMEM scratch mirroring w1_hbm;  w1_sem : DMA semaphore

    # Kick off the dominant weight transfer first so the conv below hides under it.
    w1_copy = pltpu.make_async_copy(w1_hbm_ref, w1_vmem, w1_sem)
    w1_copy.start()

    x = x_ref[...]                                             # (B*C, HW)

    # --- feature_extractor: Conv2d(C, COUT, 3, padding=1) + ReLU, in-kernel im2col ---
    shifted = []                                               # 9 masked rotated views
    k = 0
    for kh in range(KH):
        for kw in range(KW):
            dh, dw = kh - 1, kw - 1
            s = (dh * W + dw) % HW                             # lane rotation amount
            if s == 0:
                v = x
            else:                                              # v[p] = x[(p+s) mod HW]
                v = jnp.concatenate([x[:, s:], x[:, :s]], axis=1)
            # every wrapped / out-of-image lane is zeroed by the precomputed mask
            shifted.append(v * mask_ref[k:k + 1, :])
            k += 1

    # row index: k*(B*C) + b*C + ci  (8-row aligned pieces -> cheap sublane concat)
    patches = jnp.concatenate(shifted, axis=0)                 # (9*B*C, HW) = (72, 256)

    # one matmul produces every (image, out-channel) row: row index = co*B + b
    conv = jnp.dot(wc_ref[...], patches,
                   preferred_element_type=jnp.float32)         # (COUT*B, HW)
    conv = jnp.maximum(conv + bc_ref[...], 0.0)                # ReLU
    conv_bf16 = conv.astype(jnp.bfloat16)                      # cast once (hoisted)

    # --- flatten + fc: Linear(1024 -> 512) + ReLU (Dropout == identity at inference) ---
    w1_copy.wait()                                             # int8 weight now in VMEM
    acc = None
    for co in range(COUT):
        # int8 values are exactly representable in bf16; dequant scale applied later.
        w_co = w1_vmem[co].astype(jnp.float32).astype(jnp.bfloat16)   # (HW, OUT)
        part = jnp.dot(conv_bf16[co * B:(co + 1) * B, :], w_co,
                       preferred_element_type=jnp.float32)     # (B, OUT), f32 accumulate
        acc = part if acc is None else acc + part
    h = jnp.maximum(acc * s1_ref[...] + b1_ref[...], 0.0)      # dequant + bias + ReLU
    # TODO(synk): nn.Dropout() is identity in eval mode; a training-mode path would need
    # pltpu.prng_seed / pltpu.prng_random_bits masking.

    # --- predictor: Linear(512 -> 2) + Softmax(dim=-1), via VPU mul + lane reduce ---
    w2 = w2_ref[...]                                           # (N_CLASSES, OUT)
    logit_cols = [jnp.sum(h * w2[j:j + 1, :], axis=-1, keepdims=True)
                  for j in range(N_CLASSES)]
    logits = jnp.concatenate(logit_cols, axis=-1) + b2_ref[...]   # (B, N_CLASSES)
    m = jnp.max(logits, axis=-1, keepdims=True)
    e = jnp.exp(logits - m)
    # exact normalization (a 2x2 divide is negligible; rows sum to 1 to f32 precision)
    o_ref[...] = e / jnp.sum(e, axis=-1, keepdims=True)


# ---------------- wrapper ----------------

def pack_params(params):
    """One-time repack of PyTorch-layout params into kernel-ready layouts (outside jit)."""
    wc, bc, w1, b1, w2, b2 = params

    # block-diagonal-over-batch conv weight: [co*B + b, k*B*C + b*C + ci]
    wc_big = jnp.einsum('bd,ochw->obhwdc',
                        jnp.eye(B, dtype=jnp.float32),
                        wc.astype(jnp.float32)).reshape(COUT * B, KH * KW * B * C)
    bc_big = jnp.repeat(bc.astype(jnp.float32), B).reshape(COUT * B, 1)

    # precomputed "same"-padding validity masks on the flattened H*W axis
    pos = jnp.arange(HW, dtype=jnp.int32)
    row, col = pos // W, pos % W
    masks = []
    for kh in range(KH):
        for kw in range(KW):
            dh, dw = kh - 1, kw - 1
            valid = ((row + dh >= 0) & (row + dh < H) &
                     (col + dw >= 0) & (col + dw < W))
            masks.append(valid.astype(jnp.float32))
    mask9 = jnp.stack(masks, axis=0)                           # (9, HW)

    # fc weight: symmetric int8 quantization with per-output-column scale, laid out
    # (COUT, HW, OUT) so the PyTorch channel-major flatten needs no activation relayout.
    w1f = w1.astype(jnp.float32)
    absmax = jnp.maximum(jnp.max(jnp.abs(w1f), axis=0), 1e-30)
    scale = absmax / 127.0                                     # (OUT,)
    w1_q = jnp.clip(jnp.round(w1f / scale[None, :]), -127.0, 127.0).astype(jnp.int8)
    w1_q = w1_q.reshape(COUT, HW, OUT_FEATURES)
    s1_row = scale.reshape(1, OUT_FEATURES).astype(jnp.float32)

    b1_row = b1.astype(jnp.float32).reshape(1, OUT_FEATURES)
    w2_r = w2.astype(jnp.float32)                              # (N_CLASSES, OUT)
    b2_row = b2.astype(jnp.float32).reshape(1, N_CLASSES)
    return wc_big, bc_big, mask9, w1_q, s1_row, b1_row, w2_r, b2_row


def cnn_forward(x, packed):
    # Implements the feature_extract=False path of the module.
    wc_big, bc_big, mask9, w1_q, s1_row, b1_row, w2_r, b2_row = packed
    x2 = x.astype(jnp.float32).reshape(B * C, HW)              # x.to(torch.float); free reshape

    flops = 2 * B * (C * KH * KW * COUT * HW
                     + IN_FEATURES * OUT_FEATURES
                     + OUT_FEATURES * N_CLASSES)
    bytes_accessed = (x2.size * 4                              # x
                      + wc_big.size * 4 + bc_big.size * 4      # conv weight/bias
                      + mask9.size * 4                         # masks
                      + w1_q.size                              # w1 (int8)
                      + s1_row.size * 4 + b1_row.size * 4      # scale + b1
                      + w2_r.size * 4 + b2_row.size * 4        # predictor
                      + B * N_CLASSES * 4)                     # output

    vmem = pl.BlockSpec(memory_space=pltpu.MemorySpace.VMEM)
    return pl.pallas_call(
        cnn_fused_kernel,
        out_shape=jax.ShapeDtypeStruct((B, N_CLASSES), jnp.float32),
        in_specs=[vmem, vmem, vmem, vmem,
                  pl.BlockSpec(memory_space=pl.ANY),           # w1 stays in HBM (manual DMA)
                  vmem, vmem, vmem, vmem],
        out_specs=vmem,
        scratch_shapes=[pltpu.VMEM((COUT, HW, OUT_FEATURES), jnp.int8),
                        pltpu.SemaphoreType.DMA],
        cost_estimate=pl.CostEstimate(flops=flops,
                                      transcendentals=B * N_CLASSES,
                                      bytes_accessed=bytes_accessed),
    )(x2, wc_big, bc_big, mask9, w1_q, s1_row, b1_row, w2_r, b2_row)


# ---------------- params + pure-JAX reference ----------------

def init_params(key):
    k = jax.random.split(key, 6)
    wc = jax.random.normal(k[0], (COUT, C, KH, KW), jnp.float32) * 0.1
    bc = jax.random.normal(k[1], (COUT,), jnp.float32) * 0.1
    w1 = jax.random.normal(k[2], (IN_FEATURES, OUT_FEATURES), jnp.float32) / (IN_FEATURES ** 0.5)
    b1 = jax.random.normal(k[3], (OUT_FEATURES,), jnp.float32) * 0.01
    w2 = jax.random.normal(k[4], (N_CLASSES, OUT_FEATURES), jnp.float32) / (OUT_FEATURES ** 0.5)
    b2 = jax.random.normal(k[5], (N_CLASSES,), jnp.float32) * 0.01
    return wc, bc, w1, b1, w2, b2


def cnn_reference(x, params):
    """Pure-JAX reference mirroring the kernel's bf16/int8 fc numerics, for validation."""
    wc, bc, w1, b1, w2, b2 = params
    x = x.astype(jnp.float32)
    conv = jax.lax.conv_general_dilated(
        x, wc, window_strides=(1, 1), padding=((1, 1), (1, 1)),
        dimension_numbers=("NCHW", "OIHW", "NCHW"))
    conv = jnp.maximum(conv + bc.reshape(1, COUT, 1, 1), 0.0)
    feats = conv.reshape(B, -1)                                # channel-major flatten
    # mirror kernel quantization: bf16 activations, int8 w1 with per-column scale
    absmax = jnp.maximum(jnp.max(jnp.abs(w1), axis=0), 1e-30)
    scale = absmax / 127.0
    w1_q = jnp.clip(jnp.round(w1 / scale[None, :]), -127.0, 127.0)
    feats_q = feats.astype(jnp.bfloat16).astype(jnp.float32)
    h = jnp.maximum((feats_q @ w1_q) * scale[None, :] + b1[None, :], 0.0)
    logits = h @ w2.T + b2[None, :]
    return jax.nn.softmax(logits, axis=-1)


if __name__ == "__main__":
    key = jax.random.PRNGKey(0)
    kx, kp = jax.random.split(key)
    x = jax.random.normal(kx, (B, C, H, W), jnp.float32)
    params = init_params(kp)
    packed = pack_params(params)

    out = jax.block_until_ready(jax.jit(cnn_forward)(x, packed))

    assert out.shape == (B, N_CLASSES)
    assert bool(jnp.all(jnp.isfinite(out)))
    # exact softmax normalization -> rows sum to 1 within f32 rounding
    assert bool(jnp.allclose(jnp.sum(out, axis=-1), 1.0, atol=1e-3))

    ref = jax.block_until_ready(jax.jit(cnn_reference)(x, params))
    assert bool(jnp.allclose(out, ref, atol=2e-2)), (out, ref)

    print("KERNEL_OK")
</pallas_src>

<mosaic_0001>
module attributes {stable_mosaic.version = 11 : i64} {
  func.func @cnn_fused_kernel(%arg0: memref<8x256xf32, #tpu.memory_space<vmem>>, %arg1: memref<8x72xf32, #tpu.memory_space<vmem>>, %arg2: memref<8x1xf32, #tpu.memory_space<vmem>>, %arg3: memref<9x256xf32, #tpu.memory_space<vmem>>, %arg4: memref<4x256x512xi8, #tpu.memory_space<any>>, %arg5: memref<1x512xf32, #tpu.memory_space<vmem>>, %arg6: memref<1x512xf32, #tpu.memory_space<vmem>>, %arg7: memref<2x512xf32, #tpu.memory_space<vmem>>, %arg8: memref<1x2xf32, #tpu.memory_space<vmem>>, %arg9: memref<2x2xf32, #tpu.memory_space<vmem>>, %arg10: memref<4x256x512xi8, #tpu.memory_space<vmem>>, %arg11: memref<!tpu.dma_semaphore, #tpu.memory_space<semaphore_mem>>) attributes {dimension_semantics = [], scalar_prefetch = 0 : i64, scratch_operands = 2 : i64, tpu.core_type = #tpu.core_type<tc>} {
    tpu.enqueue_dma source(%arg4 : memref<4x256x512xi8, #tpu.memory_space<any>>) target(%arg10 : memref<4x256x512xi8, #tpu.memory_space<vmem>>) target_semaphore(%arg11 : memref<!tpu.dma_semaphore, #tpu.memory_space<semaphore_mem>>)
    %c0 = arith.constant 0 : index
    %c0_0 = arith.constant 0 : index
    %0 = vector.load %arg0[%c0, %c0_0] : memref<8x256xf32, #tpu.memory_space<vmem>>, vector<8x256xf32>
    %1 = vector.extract_strided_slice %0 {offsets = [0, 239], sizes = [8, 17], strides = [1, 1]} : vector<8x256xf32> to vector<8x17xf32>
    %2 = vector.extract_strided_slice %0 {offsets = [0, 0], sizes = [8, 239], strides = [1, 1]} : vector<8x256xf32> to vector<8x239xf32>
    %3 = tpu.concatenate %1, %2 in 1 : vector<8x17xf32>, vector<8x239xf32> -> vector<8x256xf32>
    %c0_1 = arith.constant 0 : index
    %c0_2 = arith.constant 0 : index
    %4 = vector.load %arg3[%c0_1, %c0_2] : memref<9x256xf32, #tpu.memory_space<vmem>>, vector<1x256xf32>
    %5 = vector.broadcast %4 : vector<1x256xf32> to vector<8x256xf32>
    %6 = arith.mulf %3, %5 : vector<8x256xf32>
    %7 = vector.extract_strided_slice %0 {offsets = [0, 240], sizes = [8, 16], strides = [1, 1]} : vector<8x256xf32> to vector<8x16xf32>
    %8 = vector.extract_strided_slice %0 {offsets = [0, 0], sizes = [8, 240], strides = [1, 1]} : vector<8x256xf32> to vector<8x240xf32>
    %9 = tpu.concatenate %7, %8 in 1 : vector<8x16xf32>, vector<8x240xf32> -> vector<8x256xf32>
    %c1 = arith.constant 1 : index
    %c0_3 = arith.constant 0 : index
    %10 = vector.load %arg3[%c1, %c0_3] : memref<9x256xf32, #tpu.memory_space<vmem>>, vector<1x256xf32>
    %11 = vector.broadcast %10 : vector<1x256xf32> to vector<8x256xf32>
    %12 = arith.mulf %9, %11 : vector<8x256xf32>
    %13 = vector.extract_strided_slice %0 {offsets = [0, 241], sizes = [8, 15], strides = [1, 1]} : vector<8x256xf32> to vector<8x15xf32>
    %14 = vector.extract_strided_slice %0 {offsets = [0, 0], sizes = [8, 241], strides = [1, 1]} : vector<8x256xf32> to vector<8x241xf32>
    %15 = tpu.concatenate %13, %14 in 1 : vector<8x15xf32>, vector<8x241xf32> -> vector<8x256xf32>
    %c2 = arith.constant 2 : index
    %c0_4 = arith.constant 0 : index
    %16 = vector.load %arg3[%c2, %c0_4] : memref<9x256xf32, #tpu.memory_space<vmem>>, vector<1x256xf32>
    %17 = vector.broadcast %16 : vector<1x256xf32> to vector<8x256xf32>
    %18 = arith.mulf %15, %17 : vector<8x256xf32>
    %19 = vector.extract_strided_slice %0 {offsets = [0, 255], sizes = [8, 1], strides = [1, 1]} : vector<8x256xf32> to vector<8x1xf32>
    %20 = vector.extract_strided_slice %0 {offsets = [0, 0], sizes = [8, 255], strides = [1, 1]} : vector<8x256xf32> to vector<8x255xf32>
    %21 = tpu.concatenate %19, %20 in 1 : vector<8x1xf32>, vector<8x255xf32> -> vector<8x256xf32>
    %c3 = arith.constant 3 : index
    %c0_5 = arith.constant 0 : index
    %22 = vector.load %arg3[%c3, %c0_5] : memref<9x256xf32, #tpu.memory_space<vmem>>, vector<1x256xf32>
    %23 = vector.broadcast %22 : vector<1x256xf32> to vector<8x256xf32>
    %24 = arith.mulf %21, %23 : vector<8x256xf32>
    %c4 = arith.constant 4 : index
    %c0_6 = arith.constant 0 : index
    %25 = vector.load %arg3[%c4, %c0_6] : memref<9x256xf32, #tpu.memory_space<vmem>>, vector<1x256xf32>
    %26 = vector.broadcast %25 : vector<1x256xf32> to vector<8x256xf32>
    %27 = arith.mulf %0, %26 : vector<8x256xf32>
    %28 = vector.extract_strided_slice %0 {offsets = [0, 1], sizes = [8, 255], strides = [1, 1]} : vector<8x256xf32> to vector<8x255xf32>
    %29 = vector.extract_strided_slice %0 {offsets = [0, 0], sizes = [8, 1], strides = [1, 1]} : vector<8x256xf32> to vector<8x1xf32>
    %30 = tpu.concatenate %28, %29 in 1 : vector<8x255xf32>, vector<8x1xf32> -> vector<8x256xf32>
    %c5 = arith.constant 5 : index
    %c0_7 = arith.constant 0 : index
    %31 = vector.load %arg3[%c5, %c0_7] : memref<9x256xf32, #tpu.memory_space<vmem>>, vector<1x256xf32>
    %32 = vector.broadcast %31 : vector<1x256xf32> to vector<8x256xf32>
    %33 = arith.mulf %30, %32 : vector<8x256xf32>
    %34 = vector.extract_strided_slice %0 {offsets = [0, 15], sizes = [8, 241], strides = [1, 1]} : vector<8x256xf32> to vector<8x241xf32>
    %35 = vector.extract_strided_slice %0 {offsets = [0, 0], sizes = [8, 15], strides = [1, 1]} : vector<8x256xf32> to vector<8x15xf32>
    %36 = tpu.concatenate %34, %35 in 1 : vector<8x241xf32>, vector<8x15xf32> -> vector<8x256xf32>
    %c6 = arith.constant 6 : index
    %c0_8 = arith.constant 0 : index
    %37 = vector.load %arg3[%c6, %c0_8] : memref<9x256xf32, #tpu.memory_space<vmem>>, vector<1x256xf32>
    %38 = vector.broadcast %37 : vector<1x256xf32> to vector<8x256xf32>
    %39 = arith.mulf %36, %38 : vector<8x256xf32>
    %40 = vector.extract_strided_slice %0 {offsets = [0, 16], sizes = [8, 240], strides = [1, 1]} : vector<8x256xf32> to vector<8x240xf32>
    %41 = vector.extract_strided_slice %0 {offsets = [0, 0], sizes = [8, 16], strides = [1, 1]} : vector<8x256xf32> to vector<8x16xf32>
    %42 = tpu.concatenate %40, %41 in 1 : vector<8x240xf32>, vector<8x16xf32> -> vector<8x256xf32>
    %c7 = arith.constant 7 : index
    %c0_9 = arith.constant 0 : index
    %43 = vector.load %arg3[%c7, %c0_9] : memref<9x256xf32, #tpu.memory_space<vmem>>, vector<1x256xf32>
    %44 = vector.broadcast %43 : vector<1x256xf32> to vector<8x256xf32>
    %45 = arith.mulf %42, %44 : vector<8x256xf32>
    %46 = vector.extract_strided_slice %0 {offsets = [0, 17], sizes = [8, 239], strides = [1, 1]} : vector<8x256xf32> to vector<8x239xf32>
    %47 = vector.extract_strided_slice %0 {offsets = [0, 0], sizes = [8, 17], strides = [1, 1]} : vector<8x256xf32> to vector<8x17xf32>
    %48 = tpu.concatenate %46, %47 in 1 : vector<8x239xf32>, vector<8x17xf32> -> vector<8x256xf32>
    %c8 = arith.constant 8 : index
    %c0_10 = arith.constant 0 : index
    %49 = vector.load %arg3[%c8, %c0_10] : memref<9x256xf32, #tpu.memory_space<vmem>>, vector<1x256xf32>
    %50 = vector.broadcast %49 : vector<1x256xf32> to vector<8x256xf32>
    %51 = arith.mulf %48, %50 : vector<8x256xf32>
    %52 = tpu.concatenate %6, %12, %18, %24, %27, %33, %39, %45, %51 in 0 : vector<8x256xf32>, vector<8x256xf32>, vector<8x256xf32>, vector<8x256xf32>, vector<8x256xf32>, vector<8x256xf32>, vector<8x256xf32>, vector<8x256xf32>, vector<8x256xf32> -> vector<72x256xf32>
    %c0_11 = arith.constant 0 : index
    %c0_12 = arith.constant 0 : index
    %53 = vector.load %arg1[%c0_11, %c0_12] : memref<8x72xf32, #tpu.memory_space<vmem>>, vector<8x72xf32>
    %cst = arith.constant dense<0.000000e+00> : vector<8x256xf32>
    %54 = tpu.matmul %53, %52, %cst {dimension_numbers = #tpu.dot_dimension_numbers<[1], [0], [0], [1], [0, 0, 1, 1], [], []>} : vector<8x72xf32>, vector<72x256xf32>, vector<8x256xf32> -> vector<8x256xf32>
    %c0_13 = arith.constant 0 : index
    %c0_14 = arith.constant 0 : index
    %55 = vector.load %arg2[%c0_13, %c0_14] : memref<8x1xf32, #tpu.memory_space<vmem>>, vector<8x1xf32>
    %56 = vector.broadcast %55 : vector<8x1xf32> to vector<8x256xf32>
    %57 = arith.addf %54, %56 : vector<8x256xf32>
    %cst_15 = arith.constant 0.000000e+00 : f32
    %58 = vector.broadcast %cst_15 : f32 to vector<8x256xf32>
    %59 = arith.maximumf %57, %58 : vector<8x256xf32>
    %60 = arith.truncf %59 : vector<8x256xf32> to vector<8x256xbf16>
    tpu.wait_dma2 semaphore(%arg11 : memref<!tpu.dma_semaphore, #tpu.memory_space<semaphore_mem>>) src(%arg4 : memref<4x256x512xi8, #tpu.memory_space<any>>) dst(%arg10 : memref<4x256x512xi8, #tpu.memory_space<vmem>>)
    %c0_16 = arith.constant 0 : index
    %c0_17 = arith.constant 0 : index
    %c0_18 = arith.constant 0 : index
    %61 = vector.load %arg10[%c0_16, %c0_17, %c0_18] : memref<4x256x512xi8, #tpu.memory_space<vmem>>, vector<1x256x512xi8>
    %62 = vector.shape_cast %61 : vector<1x256x512xi8> to vector<256x512xi8>
    %63 = arith.sitofp %62 : vector<256x512xi8> to vector<256x512xf32>
    %64 = arith.truncf %63 : vector<256x512xf32> to vector<256x512xbf16>
    %65 = vector.extract_strided_slice %60 {offsets = [0, 0], sizes = [2, 256], strides = [1, 1]} : vector<8x256xbf16> to vector<2x256xbf16>
    %cst_19 = arith.constant dense<0.000000e+00> : vector<2x512xf32>
    %66 = tpu.matmul %65, %64, %cst_19 {dimension_numbers = #tpu.dot_dimension_numbers<[1], [0], [0], [1], [0, 0, 1, 1], [], []>} : vector<2x256xbf16>, vector<256x512xbf16>, vector<2x512xf32> -> vector<2x512xf32>
    %c1_20 = arith.constant 1 : index
    %c0_21 = arith.constant 0 : index
    %c0_22 = arith.constant 0 : index
    %67 = vector.load %arg10[%c1_20, %c0_21, %c0_22] : memref<4x256x512xi8, #tpu.memory_space<vmem>>, vector<1x256x512xi8>
    %68 = vector.shape_cast %67 : vector<1x256x512xi8> to vector<256x512xi8>
    %69 = arith.sitofp %68 : vector<256x512xi8> to vector<256x512xf32>
    %70 = arith.truncf %69 : vector<256x512xf32> to vector<256x512xbf16>
    %71 = vector.extract_strided_slice %60 {offsets = [2, 0], sizes = [2, 256], strides = [1, 1]} : vector<8x256xbf16> to vector<2x256xbf16>
    %cst_23 = arith.constant dense<0.000000e+00> : vector<2x512xf32>
    %72 = tpu.matmul %71, %70, %cst_23 {dimension_numbers = #tpu.dot_dimension_numbers<[1], [0], [0], [1], [0, 0, 1, 1], [], []>} : vector<2x256xbf16>, vector<256x512xbf16>, vector<2x512xf32> -> vector<2x512xf32>
    %73 = arith.addf %66, %72 : vector<2x512xf32>
    %c2_24 = arith.constant 2 : index
    %c0_25 = arith.constant 0 : index
    %c0_26 = arith.constant 0 : index
    %74 = vector.load %arg10[%c2_24, %c0_25, %c0_26] : memref<4x256x512xi8, #tpu.memory_space<vmem>>, vector<1x256x512xi8>
    %75 = vector.shape_cast %74 : vector<1x256x512xi8> to vector<256x512xi8>
    %76 = arith.sitofp %75 : vector<256x512xi8> to vector<256x512xf32>
    %77 = arith.truncf %76 : vector<256x512xf32> to vector<256x512xbf16>
    %78 = vector.extract_strided_slice %60 {offsets = [4, 0], sizes = [2, 256], strides = [1, 1]} : vector<8x256xbf16> to vector<2x256xbf16>
    %cst_27 = arith.constant dense<0.000000e+00> : vector<2x512xf32>
    %79 = tpu.matmul %78, %77, %cst_27 {dimension_numbers = #tpu.dot_dimension_numbers<[1], [0], [0], [1], [0, 0, 1, 1], [], []>} : vector<2x256xbf16>, vector<256x512xbf16>, vector<2x512xf32> -> vector<2x512xf32>
    %80 = arith.addf %73, %79 : vector<2x512xf32>
    %c3_28 = arith.constant 3 : index
    %c0_29 = arith.constant 0 : index
    %c0_30 = arith.constant 0 : index
    %81 = vector.load %arg10[%c3_28, %c0_29, %c0_30] : memref<4x256x512xi8, #tpu.memory_space<vmem>>, vector<1x256x512xi8>
    %82 = vector.shape_cast %81 : vector<1x256x512xi8> to vector<256x512xi8>
    %83 = arith.sitofp %82 : vector<256x512xi8> to vector<256x512xf32>
    %84 = arith.truncf %83 : vector<256x512xf32> to vector<256x512xbf16>
    %85 = vector.extract_strided_slice %60 {offsets = [6, 0], sizes = [2, 256], strides = [1, 1]} : vector<8x256xbf16> to vector<2x256xbf16>
    %cst_31 = arith.constant dense<0.000000e+00> : vector<2x512xf32>
    %86 = tpu.matmul %85, %84, %cst_31 {dimension_numbers = #tpu.dot_dimension_numbers<[1], [0], [0], [1], [0, 0, 1, 1], [], []>} : vector<2x256xbf16>, vector<256x512xbf16>, vector<2x512xf32> -> vector<2x512xf32>
    %87 = arith.addf %80, %86 : vector<2x512xf32>
    %c0_32 = arith.constant 0 : index
    %c0_33 = arith.constant 0 : index
    %88 = vector.load %arg5[%c0_32, %c0_33] : memref<1x512xf32, #tpu.memory_space<vmem>>, vector<1x512xf32>
    %89 = vector.broadcast %88 : vector<1x512xf32> to vector<2x512xf32>
    %90 = arith.mulf %87, %89 : vector<2x512xf32>
    %c0_34 = arith.constant 0 : index
    %c0_35 = arith.constant 0 : index
    %91 = vector.load %arg6[%c0_34, %c0_35] : memref<1x512xf32, #tpu.memory_space<vmem>>, vector<1x512xf32>
    %92 = vector.broadcast %91 : vector<1x512xf32> to vector<2x512xf32>
    %93 = arith.addf %90, %92 : vector<2x512xf32>
    %cst_36 = arith.constant 0.000000e+00 : f32
    %94 = vector.broadcast %cst_36 : f32 to vector<2x512xf32>
    %95 = arith.maximumf %93, %94 : vector<2x512xf32>
    %c0_37 = arith.constant 0 : index
    %c0_38 = arith.constant 0 : index
    %96 = vector.load %arg7[%c0_37, %c0_38] : memref<2x512xf32, #tpu.memory_space<vmem>>, vector<2x512xf32>
    %97 = vector.extract_strided_slice %96 {offsets = [0, 0], sizes = [1, 512], strides = [1, 1]} : vector<2x512xf32> to vector<1x512xf32>
    %98 = vector.broadcast %97 : vector<1x512xf32> to vector<2x512xf32>
    %99 = arith.mulf %95, %98 : vector<2x512xf32>
    %cst_39 = arith.constant dense<0.000000e+00> : vector<2xf32>
    %100 = vector.multi_reduction <add>, %99, %cst_39 [1] : vector<2x512xf32> to vector<2xf32>
    %101 = vector.shape_cast %100 : vector<2xf32> to vector<2x1xf32>
    %102 = vector.extract_strided_slice %96 {offsets = [1, 0], sizes = [1, 512], strides = [1, 1]} : vector<2x512xf32> to vector<1x512xf32>
    %103 = vector.broadcast %102 : vector<1x512xf32> to vector<2x512xf32>
    %104 = arith.mulf %95, %103 : vector<2x512xf32>
    %cst_40 = arith.constant dense<0.000000e+00> : vector<2xf32>
    %105 = vector.multi_reduction <add>, %104, %cst_40 [1] : vector<2x512xf32> to vector<2xf32>
    %106 = vector.shape_cast %105 : vector<2xf32> to vector<2x1xf32>
    %107 = tpu.concatenate %101, %106 in 1 : vector<2x1xf32>, vector<2x1xf32> -> vector<2x2xf32>
    %c0_41 = arith.constant 0 : index
    %c0_42 = arith.constant 0 : index
    %108 = vector.load %arg8[%c0_41, %c0_42] : memref<1x2xf32, #tpu.memory_space<vmem>>, vector<1x2xf32>
    %109 = vector.broadcast %108 : vector<1x2xf32> to vector<2x2xf32>
    %110 = arith.addf %107, %109 : vector<2x2xf32>
    %cst_43 = arith.constant dense<0xFF800000> : vector<2xf32>
    %111 = vector.multi_reduction <maximumf>, %110, %cst_43 [1] : vector<2x2xf32> to vector<2xf32>
    %112 = vector.shape_cast %111 : vector<2xf32> to vector<2x1xf32>
    %113 = vector.broadcast %112 : vector<2x1xf32> to vector<2x2xf32>
    %114 = arith.subf %110, %113 : vector<2x2xf32>
    %115 = math.exp %114 : vector<2x2xf32>
    %cst_44 = arith.constant dense<0.000000e+00> : vector<2xf32>
    %116 = vector.multi_reduction <add>, %115, %cst_44 [1] : vector<2x2xf32> to vector<2xf32>
    %117 = vector.shape_cast %116 : vector<2xf32> to vector<2x1xf32>
    %118 = vector.broadcast %117 : vector<2x1xf32> to vector<2x2xf32>
    %119 = arith.divf %115, %118 : vector<2x2xf32>
    %c0_45 = arith.constant 0 : index
    %c0_46 = arith.constant 0 : index
    %120 = vector.load %arg9[%c0_45, %c0_46] : memref<2x2xf32, #tpu.memory_space<vmem>>, vector<2x2xf32>
    tpu.vector_store %arg9[%c0_45, %c0_46], %119 {strides = array<i32>} : memref<2x2xf32, #tpu.memory_space<vmem>>, vector<2x2xf32>,
    return
  }
}

</mosaic_0001>

<llo_original>
// kernel: cnn_forward.1
$region0: #{cnn_forward.1}
  #allocation0 [shape = 'u32[]', space=smem, size = 0x4, offset = 0x4, fixed_abs, tag = 'smem constant byte address 0x4 - core index']
  #allocation1 [shape = 'u32[144,128]{1,0:T(1,128)}', space=vmem, size = 0x12000, scoped, tag = 'internal scratch']
  #allocation2 [shape = 's8[4,256,512]{2,1,0:T(32,128)(4,1)}', space=vmem, size = 0x80000, scoped, tag = 'scratch operand']
  #allocation3 [shape = 's32[1]{0}', space=sflag, size = 0x4, scoped, tag = 'scratch operand']
  #allocation6 [shape = 's32[]', space=sflag, size = 0x4, offset = 0, fixed_abs, tag = 'sflag constant byte address 0x0 - dummy sync flag']
  #allocation7 [shape = 's32[]', space=sflag, size = 0x4, offset = 0, fixed_abs, tag = 'sflag constant byte address 0x0 - dummy sync flag']
  #allocation8 [shape = 'u32[]', space=smem, size = 0x4, offset = 0x44, fixed_abs, tag = 'smem constant byte address 0x44 - assertion arg 0']
  #allocation9 [shape = 'u32[]', space=smem, size = 0x4, offset = 0x48, fixed_abs, tag = 'smem constant byte address 0x48 - assertion arg 1']
  %s0 = inlined_call_operand.vmem [shape: f32[8,256], index: 0, kind: input, shape index: {}]
  %s1 = inlined_call_operand.vmem [shape: f32[8,72], index: 1, kind: input, shape index: {}]
  %s2 = inlined_call_operand.vmem [shape: f32[8,1], index: 2, kind: input, shape index: {}]
  %s3 = inlined_call_operand.vmem [shape: f32[9,256], index: 3, kind: input, shape index: {}]
  %s4 = inlined_call_operand.hbm [shape: s8[4,256,512], index: 4, kind: input, shape index: {}]
  %s5 = inlined_call_operand.vmem [shape: f32[1,512], index: 5, kind: input, shape index: {}]
  %s6 = inlined_call_operand.vmem [shape: f32[1,512], index: 6, kind: input, shape index: {}]
  %s7 = inlined_call_operand.vmem [shape: f32[2,512], index: 7, kind: input, shape index: {}]
  %s8 = inlined_call_operand.vmem [shape: f32[1,2], index: 8, kind: input, shape index: {}]
  %s9 = inlined_call_operand.hbm [shape: f32[2,2], index: 9, kind: output, shape index: {}]
  %s10 = sld [smem:[#allocation0]]
  $region46: #{cnn_forward.1} parent=0
    _
  %s12 = ssub.s32 1, %s10
  %s13 = scalar_select 0, %s12, %s10
  $region1: #{cnn_forward.1} parent=0
    #allocation4 [shape = 'u8[1024]{0}', space=vmem, size = 0x400, scoped, tag = 'output window, operand 0, single buffered']
    #allocation5 [shape = 's32[1]{0}', space=sflag, size = 0x4, scoped, tag = 'scoped memory for cnn_forward.1']
    %14 = vsyncpa [#allocation5], 0
    // Predicated region
    $region2: #{cnn_forward.1} parent=1 // pred_check
      _
    $region3: #{cnn_forward.1} parent=1 // pred_check_branch
      %16 = sbr.rel (0) target = $region5
    $region4: #{cnn_forward.1} parent=1 // pred_region
      _
    $region5: #{cnn_forward.1} parent=1 // pred_fallthru
      _
    // Predicated region
    $region6: #{cnn_forward.1} parent=1 // pred_check
      _
    $region7: #{cnn_forward.1} parent=1 // pred_check_branch
      %18 = sbr.rel (0) target = $region9
    $region8: #{cnn_forward.1} parent=1 // pred_region
      _
    $region9: #{cnn_forward.1} parent=1 // pred_fallthru
      _
    // Predicated region
    $region10: #{cnn_forward.1} parent=1 // pred_check
      _
    $region11: #{cnn_forward.1} parent=1 // pred_check_branch
      %20 = sbr.rel (0) target = $region13
    $region12: #{cnn_forward.1} parent=1 // pred_region
      _
    $region13: #{cnn_forward.1} parent=1 // pred_fallthru
      _
    // Predicated region
    $region14: #{cnn_forward.1} parent=1 // pred_check
      _
    $region15: #{cnn_forward.1} parent=1 // pred_check_branch
      %22 = sbr.rel (0) target = $region17
    $region16: #{cnn_forward.1} parent=1 // pred_region
      _
    $region17: #{cnn_forward.1} parent=1 // pred_fallthru
      _
    // Predicated region
    $region18: #{cnn_forward.1} parent=1 // pred_check
      _
    $region19: #{cnn_forward.1} parent=1 // pred_check_branch
      %24 = sbr.rel (0) target = $region21
    $region20: #{cnn_forward.1} parent=1 // pred_region
      _
    $region21: #{cnn_forward.1} parent=1 // pred_fallthru
      _
    // Predicated region
    $region22: #{cnn_forward.1} parent=1 // pred_check
      _
    $region23: #{cnn_forward.1} parent=1 // pred_check_branch
      %26 = sbr.rel (0) target = $region25
    $region24: #{cnn_forward.1} parent=1 // pred_region
      _
    $region25: #{cnn_forward.1} parent=1 // pred_fallthru
      _
    // Predicated region
    $region26: #{cnn_forward.1} parent=1 // pred_check
      _
    $region27: #{cnn_forward.1} parent=1 // pred_check_branch
      %28 = sbr.rel (0) target = $region29
    $region28: #{cnn_forward.1} parent=1 // pred_region
      _
    $region29: #{cnn_forward.1} parent=1 // pred_fallthru
      _
    // Predicated region
    $region30: #{cnn_forward.1} parent=1 // pred_check
      _
    $region31: #{cnn_forward.1} parent=1 // pred_check_branch
      %30 = sbr.rel (0) target = $region33
    $region32: #{cnn_forward.1} parent=1 // pred_region
      _
    $region33: #{cnn_forward.1} parent=1 // pred_fallthru
      _
    // Predicated region
    $region34: #{cnn_forward.1} parent=1 // pred_check
      _
    $region35: #{cnn_forward.1} parent=1 // pred_check_branch
      %32 = sbr.rel target = $region37
    $region36: #{cnn_forward.1} parent=1 // pred_region
      %33 = sst [smem:[#allocation8]] [#allocation7]
      %34 = sst [smem:[#allocation9]] [#allocation6]
    $region37: #{cnn_forward.1} parent=1 // pred_fallthru
      _
    %36 = shalt.err (0)
    %s38 = sshll.u32 [#allocation2], 4
    %s39 = int_to_ptr.vmem [resolvable:$true] %s38
    %41 = dma.hbm_to_vmem [thread:$0]  %s4, 16384, %s39, [#allocation3]
    %v42 = vld [vmem:[%s0] sm:$0xff]
    %v43 = vld [vmem:[%s0 + $0x8] sm:$0xff]
    %45 = vrot.lane.b32.xlu0 %v43, 17
    %v46 = vpop.permute.xlu0 %45
    %49 = vrot.lane.b32.xlu0 %v42, 17
    %v50 = vpop.permute.xlu0 %49
    %vm51 = vcmask 138240
    %v52 = vsel %vm51, %v50, %v46
    %v55 = vsel %vm51, %v46, %v50
    %v56 = vld [vmem:[%s3] ss:$8 sm:$0x3]
    %v58 = vlaneseq
    %v59 = vshrl.u32 %v58, 7
    %v60 = vsub.s32 0, %v59
    %v61 = vrot.slane %v56, %v60
    %v62 = vlaneseq
    %v63 = vshrl.u32 %v62, 7
    %v64 = vsub.s32 1, %v63
    %v65 = vrot.slane %v56, %v64
    %v68 = vmul.f32 %v55, %v61
    %v69 = vmul.f32 %v52, %v65
    %70 = vrot.lane.b32.xlu0 %v43, 16
    %v71 = vpop.permute.xlu0 %70
    %73 = vrot.lane.b32.xlu0 %v42, 16
    %v74 = vpop.permute.xlu0 %73
    %vm75 = vcmask 130048
    %v76 = vsel %vm75, %v74, %v71
    %v79 = vsel %vm75, %v71, %v74
    %s80 = scalar_lea.vmem %s3, 1
    %v81 = vld [vmem:[%s80] ss:$8 sm:$0x3]
    %v83 = vlaneseq
    %v84 = vshrl.u32 %v83, 7
    %v85 = vsub.s32 0, %v84
    %v86 = vrot.slane %v81, %v85
    %v87 = vlaneseq
    %v88 = vshrl.u32 %v87, 7
    %v89 = vsub.s32 1, %v88
    %v90 = vrot.slane %v81, %v89
    %v93 = vmul.f32 %v79, %v86
    %v94 = vmul.f32 %v76, %v90
    %95 = vrot.lane.b32.xlu0 %v43, 15
    %v96 = vpop.permute.xlu0 %95
    %98 = vrot.lane.b32.xlu0 %v42, 15
    %v99 = vpop.permute.xlu0 %98
    %vm100 = vcmask 121856
    %v101 = vsel %vm100, %v99, %v96
    %v104 = vsel %vm100, %v96, %v99
    %s105 = scalar_lea.vmem %s3, 2
    %v106 = vld [vmem:[%s105] ss:$8 sm:$0x3]
    %v108 = vlaneseq
    %v109 = vshrl.u32 %v108, 7
    %v110 = vsub.s32 0, %v109
    %v111 = vrot.slane %v106, %v110
    %v112 = vlaneseq
    %v113 = vshrl.u32 %v112, 7
    %v114 = vsub.s32 1, %v113
    %v115 = vrot.slane %v106, %v114
    %v118 = vmul.f32 %v104, %v111
    %v119 = vmul.f32 %v101, %v115
    %120 = vrot.lane.b32.xlu0 %v43, 1
    %v121 = vpop.permute.xlu0 %120
    %123 = vrot.lane.b32.xlu0 %v42, 1
    %v124 = vpop.permute.xlu0 %123
    %vm125 = vcmask 7168
    %v126 = vsel %vm125, %v124, %v121
    %v129 = vsel %vm125, %v121, %v124
    %s130 = scalar_lea.vmem %s3, 3
    %v131 = vld [vmem:[%s130] ss:$8 sm:$0x3]
    %v133 = vlaneseq
    %v134 = vshrl.u32 %v133, 7
    %v135 = vsub.s32 0, %v134
    %v136 = vrot.slane %v131, %v135
    %v137 = vlaneseq
    %v138 = vshrl.u32 %v137, 7
    %v139 = vsub.s32 1, %v138
    %v140 = vrot.slane %v131, %v139
    %v143 = vmul.f32 %v129, %v136
    %v144 = vmul.f32 %v126, %v140
    %s145 = scalar_lea.vmem %s3, 4
    %v146 = vld [vmem:[%s145] ss:$8 sm:$0x3]
    %v148 = vlaneseq
    %v149 = vshrl.u32 %v148, 7
    %v150 = vsub.s32 0, %v149
    %v151 = vrot.slane %v146, %v150
    %v152 = vlaneseq
    %v153 = vshrl.u32 %v152, 7
    %v154 = vsub.s32 1, %v153
    %v155 = vrot.slane %v146, %v154
    %v158 = vmul.f32 %v42, %v151
    %v159 = vmul.f32 %v43, %v155
    %160 = vrot.lane.b32.xlu0 %v42, 127
    %v161 = vpop.permute.xlu0 %160
    %162 = vrot.lane.b32.xlu0 %v43, 127
    %v163 = vpop.permute.xlu0 %162
    %vm164 = vcmask 1039360
    %v165 = vsel %vm164, %v161, %v163
    %v169 = vsel %vm164, %v163, %v161
    %s170 = scalar_lea.vmem %s3, 5
    %v171 = vld [vmem:[%s170] ss:$8 sm:$0x3]
    %v173 = vlaneseq
    %v174 = vshrl.u32 %v173, 7
    %v175 = vsub.s32 0, %v174
    %v176 = vrot.slane %v171, %v175
    %v177 = vlaneseq
    %v178 = vshrl.u32 %v177, 7
    %v179 = vsub.s32 1, %v178
    %v180 = vrot.slane %v171, %v179
    %v183 = vmul.f32 %v165, %v176
    %v184 = vmul.f32 %v169, %v180
    %185 = vrot.lane.b32.xlu0 %v42, 113
    %v186 = vpop.permute.xlu0 %185
    %187 = vrot.lane.b32.xlu0 %v43, 113
    %v188 = vpop.permute.xlu0 %187
    %vm189 = vcmask 924672
    %v190 = vsel %vm189, %v186, %v188
    %v194 = vsel %vm189, %v188, %v186
    %s195 = scalar_lea.vmem %s3, 6
    %v196 = vld [vmem:[%s195] ss:$8 sm:$0x3]
    %v198 = vlaneseq
    %v199 = vshrl.u32 %v198, 7
    %v200 = vsub.s32 0, %v199
    %v201 = vrot.slane %v196, %v200
    %v202 = vlaneseq
    %v203 = vshrl.u32 %v202, 7
    %v204 = vsub.s32 1, %v203
    %v205 = vrot.slane %v196, %v204
    %v208 = vmul.f32 %v190, %v201
    %v209 = vmul.f32 %v194, %v205
    %210 = vrot.lane.b32.xlu0 %v42, 112
    %v211 = vpop.permute.xlu0 %210
    %212 = vrot.lane.b32.xlu0 %v43, 112
    %v213 = vpop.permute.xlu0 %212
    %vm214 = vcmask 916480
    %v215 = vsel %vm214, %v211, %v213
    %v219 = vsel %vm214, %v213, %v211
    %s220 = scalar_lea.vmem %s3, 7
    %v221 = vld [vmem:[%s220] ss:$8 sm:$0x3]
    %v223 = vlaneseq
    %v224 = vshrl.u32 %v223, 7
    %v225 = vsub.s32 0, %v224
    %v226 = vrot.slane %v221, %v225
    %v227 = vlaneseq
    %v228 = vshrl.u32 %v227, 7
    %v229 = vsub.s32 1, %v228
    %v230 = vrot.slane %v221, %v229
    %v233 = vmul.f32 %v215, %v226
    %v234 = vmul.f32 %v219, %v230
    %235 = vrot.lane.b32.xlu0 %v42, 111
    %v236 = vpop.permute.xlu0 %235
    %237 = vrot.lane.b32.xlu0 %v43, 111
    %v238 = vpop.permute.xlu0 %237
    %vm239 = vcmask 908288
    %v240 = vsel %vm239, %v236, %v238
    %v244 = vsel %vm239, %v238, %v236
    %s245 = scalar_lea.vmem %s3, 16
    %v246 = vld [vmem:[%s245] ss:$8 sm:$0x3]
    %v248 = vlaneseq
    %v249 = vshrl.u32 %v248, 7
    %v250 = vsub.s32 0, %v249
    %v251 = vrot.slane %v246, %v250
    %v252 = vlaneseq
    %v253 = vshrl.u32 %v252, 7
    %v254 = vsub.s32 1, %v253
    %v255 = vrot.slane %v246, %v254
    %v258 = vmul.f32 %v240, %v251
    %v259 = vmul.f32 %v244, %v255
    %v260 = vld [vmem:[%s1] sm:$0xff]
    %v261 = vld [vmem:[%s2] sm:$0xff]
    %263 = vset.pattern.permute.xlu0 0
    %264 = vperm.xlu0 %263, %v261
    %v265 = vpop.permute.xlu0 %264
    %vm267 = vcmask 588800
    %v269 = vsel %vm267, %v260, 0
    %271 = vmatprep.subr.mxu0 0.0
    %272 = vmatpush1.msra.mxu0 0.0
    %273 = vmatprep.subr.mxu0 0.0
    %274 = vmatpush1.msra.mxu0 0.0
    %275 = vmatprep.subr.mxu0 0.0
    %276 = vmatpush1.msra.mxu0 0.0
    %277 = vmatprep.subr.mxu0 0.0
    %278 = vmatpush1.msra.mxu0 0.0
    %279 = vmatprep.subr.mxu0 0.0
    %280 = vmatpush1.msra.mxu0 0.0
    %281 = vmatprep.subr.mxu0 0.0
    %282 = vmatpush1.msra.mxu0 0.0
    %283 = vmatprep.subr.mxu0 0.0
    %284 = vmatpush1.msra.mxu0 0.0
    %285 = vmatprep.subr.mxu0 %v259
    %286 = vmatpush1.msra.mxu0 %v258
    %287 = vmatprep.subr.mxu0 %v234
    %288 = vmatpush1.msra.mxu0 %v233
    %289 = vmatprep.subr.mxu0 %v209
    %290 = vmatpush1.msra.mxu0 %v208
    %291 = vmatprep.subr.mxu0 %v184
    %292 = vmatpush1.msra.mxu0 %v183
    %293 = vmatprep.subr.mxu0 %v159
    %294 = vmatpush1.msra.mxu0 %v158
    %295 = vmatprep.subr.mxu0 %v144
    %296 = vmatpush1.msra.mxu0 %v143
    %297 = vmatprep.subr.mxu0 %v119
    %298 = vmatpush1.msra.mxu0 %v118
    %299 = vmatprep.subr.mxu0 %v94
    %300 = vmatpush1.msra.mxu0 %v93
    %301 = vmatprep.subr.mxu0 %v69
    %302 = vmatpush1.msra.mxu0 %v68
    %303 = vmatprep.subr.mxu0 0.0
    %304 = vmatpush2.msra.mxu0 0.0
    %305 = vmatprep.subr.mxu0 0.0
    %306 = vmatpush2.msra.mxu0 0.0
    %307 = vmatprep.subr.mxu0 0.0
    %308 = vmatpush2.msra.mxu0 0.0
    %309 = vmatprep.subr.mxu0 0.0
    %310 = vmatpush2.msra.mxu0 0.0
    %311 = vmatprep.subr.mxu0 0.0
    %312 = vmatpush2.msra.mxu0 0.0
    %313 = vmatprep.subr.mxu0 0.0
    %314 = vmatpush2.msra.mxu0 0.0
    %315 = vmatprep.subr.mxu0 0.0
    %316 = vmatpush2.msra.mxu0 0.0
    %317 = vmatprep.subr.mxu0 0.0
    %318 = vmatpush2.msra.mxu0 0.0
    %319 = vmatprep.subr.mxu0 0.0
    %320 = vmatpush2.msra.mxu0 0.0
    %321 = vmatprep.subr.mxu0 0.0
    %322 = vmatpush2.msra.mxu0 0.0
    %323 = vmatprep.subr.mxu0 0.0
    %324 = vmatpush2.msra.mxu0 0.0
    %325 = vmatprep.subr.mxu0 0.0
    %326 = vmatpush2.msra.mxu0 0.0
    %327 = vmatprep.subr.mxu0 0.0
    %328 = vmatpush2.msra.mxu0 0.0
    %329 = vmatprep.subr.mxu0 0.0
    %330 = vmatpush2.msra.mxu0 0.0
    %331 = vmatprep.subr.mxu0 0.0
    %332 = vmatpush2.msra.mxu0 0.0
    %333 = vmatprep.subr.mxu0 0.0
    %334 = vmatpush2.msra.mxu0 0.0
    %335 = vmatprep.mubr.f32.mxu0 0.0
    %336 = vmatmul.mubr.f32.gmra.mxu0 %v269
    %v337 = vpop.f32.mrf.mxu0
    %v338 = vadd.f32 %v265, %v337
    %v339 = vpop.f32.mrf.mxu0
    %v340 = vadd.f32 %v265, %v339
    %341 = vdwg.mxu0
    %v342 = vmax.f32 %v338, 0.0
    %v343 = vmax.f32 %v340, 0.0
    %v344 = vpack.c.bf16 %v342, %v342
    %v345 = vpack.c.bf16 %v343, %v343
    %s346 = smul.u32 2, 4
    %s347 = smul.u32 %s346, 32
    %s348 = smul.u32 %s347, 4
    %s349 = sshll.u32 %s348, 4
    %350 = dma.done [#allocation3], %s349
    %v351 = vld [vmem:[#allocation2] sm:$0xff]
    %v352 = vld [vmem:[#allocation2 + $0x8] sm:$0xff]
    %v353 = vld [vmem:[#allocation2 + $0x10] sm:$0xff]
    %v354 = vld [vmem:[#allocation2 + $0x18] sm:$0xff]
    %v355 = vld [vmem:[#allocation2 + $0x20] sm:$0xff]
    %v356 = vld [vmem:[#allocation2 + $0x28] sm:$0xff]
    %v357 = vld [vmem:[#allocation2 + $0x30] sm:$0xff]
    %v358 = vld [vmem:[#allocation2 + $0x38] sm:$0xff]
    %v359 = vld [vmem:[#allocation2 + $0x40] sm:$0xff]
    %v360 = vld [vmem:[#allocation2 + $0x48] sm:$0xff]
    %v361 = vld [vmem:[#allocation2 + $0x50] sm:$0xff]
    %v362 = vld [vmem:[#allocation2 + $0x58] sm:$0xff]
    %v363 = vld [vmem:[#allocation2 + $0x60] sm:$0xff]
    %v364 = vld [vmem:[#allocation2 + $0x68] sm:$0xff]
    %v365 = vld [vmem:[#allocation2 + $0x70] sm:$0xff]
    %v366 = vld [vmem:[#allocation2 + $0x78] sm:$0xff]
    %v367 = vld [vmem:[#allocation2 + $0x80] sm:$0xff]
    %v368 = vld [vmem:[#allocation2 + $0x88] sm:$0xff]
    %v369 = vld [vmem:[#allocation2 + $0x90] sm:$0xff]
    %v370 = vld [vmem:[#allocation2 + $0x98] sm:$0xff]
    %v371 = vld [vmem:[#allocation2 + $0xa0] sm:$0xff]
    %v372 = vld [vmem:[#allocation2 + $0xa8] sm:$0xff]
    %v373 = vld [vmem:[#allocation2 + $0xb0] sm:$0xff]
    %v374 = vld [vmem:[#allocation2 + $0xb8] sm:$0xff]
    %v375 = vld [vmem:[#allocation2 + $0xc0] sm:$0xff]
    %v376 = vld [vmem:[#allocation2 + $0xc8] sm:$0xff]
    %v377 = vld [vmem:[#allocation2 + $0xd0] sm:$0xff]
    %v378 = vld [vmem:[#allocation2 + $0xd8] sm:$0xff]
    %v379 = vld [vmem:[#allocation2 + $0xe0] sm:$0xff]
    %v380 = vld [vmem:[#allocation2 + $0xe8] sm:$0xff]
    %v381 = vld [vmem:[#allocation2 + $0xf0] sm:$0xff]
    %v382 = vld [vmem:[#allocation2 + $0xf8] sm:$0xff]
    %v383 = vunpack.c.l.s8.bf16 %v351
    %v384 = vunpack.c.l.s8.bf16 %v352
    %v385 = vunpack.c.l.s8.bf16 %v353
    %v386 = vunpack.c.l.s8.bf16 %v354
    %v387 = vunpack.c.h.s8.bf16 %v351
    %v388 = vunpack.c.h.s8.bf16 %v352
    %v389 = vunpack.c.h.s8.bf16 %v353
    %v390 = vunpack.c.h.s8.bf16 %v354
    %v391 = vunpack.c.l.s8.bf16 %v355
    %v392 = vunpack.c.l.s8.bf16 %v356
    %v393 = vunpack.c.l.s8.bf16 %v357
    %v394 = vunpack.c.l.s8.bf16 %v358
    %v395 = vunpack.c.h.s8.bf16 %v355
    %v396 = vunpack.c.h.s8.bf16 %v356
    %v397 = vunpack.c.h.s8.bf16 %v357
    %v398 = vunpack.c.h.s8.bf16 %v358
    %v399 = vunpack.c.l.s8.bf16 %v359
    %v400 = vunpack.c.l.s8.bf16 %v360
    %v401 = vunpack.c.l.s8.bf16 %v361
    %v402 = vunpack.c.l.s8.bf16 %v362
    %v403 = vunpack.c.h.s8.bf16 %v359
    %v404 = vunpack.c.h.s8.bf16 %v360
    %v405 = vunpack.c.h.s8.bf16 %v361
    %v406 = vunpack.c.h.s8.bf16 %v362
    %v407 = vunpack.c.l.s8.bf16 %v363
    %v408 = vunpack.c.l.s8.bf16 %v364
    %v409 = vunpack.c.l.s8.bf16 %v365
    %v410 = vunpack.c.l.s8.bf16 %v366
    %v411 = vunpack.c.h.s8.bf16 %v363
    %v412 = vunpack.c.h.s8.bf16 %v364
    %v413 = vunpack.c.h.s8.bf16 %v365
    %v414 = vunpack.c.h.s8.bf16 %v366
    %v415 = vunpack.c.l.s8.bf16 %v367
    %v416 = vunpack.c.l.s8.bf16 %v368
    %v417 = vunpack.c.l.s8.bf16 %v369
    %v418 = vunpack.c.l.s8.bf16 %v370
    %v419 = vunpack.c.h.s8.bf16 %v367
    %v420 = vunpack.c.h.s8.bf16 %v368
    %v421 = vunpack.c.h.s8.bf16 %v369
    %v422 = vunpack.c.h.s8.bf16 %v370
    %v423 = vunpack.c.l.s8.bf16 %v371
    %v424 = vunpack.c.l.s8.bf16 %v372
    %v425 = vunpack.c.l.s8.bf16 %v373
    %v426 = vunpack.c.l.s8.bf16 %v374
    %v427 = vunpack.c.h.s8.bf16 %v371
    %v428 = vunpack.c.h.s8.bf16 %v372
    %v429 = vunpack.c.h.s8.bf16 %v373
    %v430 = vunpack.c.h.s8.bf16 %v374
    %v431 = vunpack.c.l.s8.bf16 %v375
    %v432 = vunpack.c.l.s8.bf16 %v376
    %v433 = vunpack.c.l.s8.bf16 %v377
    %v434 = vunpack.c.l.s8.bf16 %v378
    %v435 = vunpack.c.h.s8.bf16 %v375
    %v436 = vunpack.c.h.s8.bf16 %v376
    %v437 = vunpack.c.h.s8.bf16 %v377
    %v438 = vunpack.c.h.s8.bf16 %v378
    %v439 = vunpack.c.l.s8.bf16 %v379
    %v440 = vunpack.c.l.s8.bf16 %v380
    %v441 = vunpack.c.l.s8.bf16 %v381
    %v442 = vunpack.c.l.s8.bf16 %v382
    %v443 = vunpack.c.h.s8.bf16 %v379
    %v444 = vunpack.c.h.s8.bf16 %v380
    %v445 = vunpack.c.h.s8.bf16 %v381
    %v446 = vunpack.c.h.s8.bf16 %v382
    %s447 = scalar_lea.vmem [#allocation2], 256
    %v448 = vld [vmem:[%s447] sm:$0xff]
    %v449 = vld [vmem:[%s447 + $0x8] sm:$0xff]
    %v450 = vld [vmem:[%s447 + $0x10] sm:$0xff]
    %v451 = vld [vmem:[%s447 + $0x18] sm:$0xff]
    %v452 = vld [vmem:[%s447 + $0x20] sm:$0xff]
    %v453 = vld [vmem:[%s447 + $0x28] sm:$0xff]
    %v454 = vld [vmem:[%s447 + $0x30] sm:$0xff]
    %v455 = vld [vmem:[%s447 + $0x38] sm:$0xff]
    %v456 = vld [vmem:[%s447 + $0x40] sm:$0xff]
    %v457 = vld [vmem:[%s447 + $0x48] sm:$0xff]
    %v458 = vld [vmem:[%s447 + $0x50] sm:$0xff]
    %v459 = vld [vmem:[%s447 + $0x58] sm:$0xff]
    %v460 = vld [vmem:[%s447 + $0x60] sm:$0xff]
    %v461 = vld [vmem:[%s447 + $0x68] sm:$0xff]
    %v462 = vld [vmem:[%s447 + $0x70] sm:$0xff]
    %v463 = vld [vmem:[%s447 + $0x78] sm:$0xff]
    %v464 = vld [vmem:[%s447 + $0x80] sm:$0xff]
    %v465 = vld [vmem:[%s447 + $0x88] sm:$0xff]
    %v466 = vld [vmem:[%s447 + $0x90] sm:$0xff]
    %v467 = vld [vmem:[%s447 + $0x98] sm:$0xff]
    %v468 = vld [vmem:[%s447 + $0xa0] sm:$0xff]
    %v469 = vld [vmem:[%s447 + $0xa8] sm:$0xff]
    %v470 = vld [vmem:[%s447 + $0xb0] sm:$0xff]
    %v471 = vld [vmem:[%s447 + $0xb8] sm:$0xff]
    %v472 = vld [vmem:[%s447 + $0xc0] sm:$0xff]
    %v473 = vld [vmem:[%s447 + $0xc8] sm:$0xff]
    %v474 = vld [vmem:[%s447 + $0xd0] sm:$0xff]
    %v475 = vld [vmem:[%s447 + $0xd8] sm:$0xff]
    %v476 = vld [vmem:[%s447 + $0xe0] sm:$0xff]
    %v477 = vld [vmem:[%s447 + $0xe8] sm:$0xff]
    %v478 = vld [vmem:[%s447 + $0xf0] sm:$0xff]
    %v479 = vld [vmem:[%s447 + $0xf8] sm:$0xff]
    %v480 = vunpack.c.l.s8.bf16 %v448
    %v481 = vunpack.c.l.s8.bf16 %v449
    %v482 = vunpack.c.l.s8.bf16 %v450
    %v483 = vunpack.c.l.s8.bf16 %v451
    %v484 = vunpack.c.h.s8.bf16 %v448
    %v485 = vunpack.c.h.s8.bf16 %v449
    %v486 = vunpack.c.h.s8.bf16 %v450
    %v487 = vunpack.c.h.s8.bf16 %v451
    %v488 = vunpack.c.l.s8.bf16 %v452
    %v489 = vunpack.c.l.s8.bf16 %v453
    %v490 = vunpack.c.l.s8.bf16 %v454
    %v491 = vunpack.c.l.s8.bf16 %v455
    %v492 = vunpack.c.h.s8.bf16 %v452
    %v493 = vunpack.c.h.s8.bf16 %v453
    %v494 = vunpack.c.h.s8.bf16 %v454
    %v495 = vunpack.c.h.s8.bf16 %v455
    %v496 = vunpack.c.l.s8.bf16 %v456
    %v497 = vunpack.c.l.s8.bf16 %v457
    %v498 = vunpack.c.l.s8.bf16 %v458
    %v499 = vunpack.c.l.s8.bf16 %v459
    %v500 = vunpack.c.h.s8.bf16 %v456
    %v501 = vunpack.c.h.s8.bf16 %v457
    %v502 = vunpack.c.h.s8.bf16 %v458
    %v503 = vunpack.c.h.s8.bf16 %v459
    %v504 = vunpack.c.l.s8.bf16 %v460
    %v505 = vunpack.c.l.s8.bf16 %v461
    %v506 = vunpack.c.l.s8.bf16 %v462
    %v507 = vunpack.c.l.s8.bf16 %v463
    %v508 = vunpack.c.h.s8.bf16 %v460
    %v509 = vunpack.c.h.s8.bf16 %v461
    %v510 = vunpack.c.h.s8.bf16 %v462
    %v511 = vunpack.c.h.s8.bf16 %v463
    %v512 = vunpack.c.l.s8.bf16 %v464
    %v513 = vunpack.c.l.s8.bf16 %v465
    %v514 = vunpack.c.l.s8.bf16 %v466
    %v515 = vunpack.c.l.s8.bf16 %v467
    %v516 = vunpack.c.h.s8.bf16 %v464
    %v517 = vunpack.c.h.s8.bf16 %v465
    %v518 = vunpack.c.h.s8.bf16 %v466
    %v519 = vunpack.c.h.s8.bf16 %v467
    %v520 = vunpack.c.l.s8.bf16 %v468
    %v521 = vunpack.c.l.s8.bf16 %v469
    %v522 = vunpack.c.l.s8.bf16 %v470
    %v523 = vunpack.c.l.s8.bf16 %v471
    %v524 = vunpack.c.h.s8.bf16 %v468
    %v525 = vunpack.c.h.s8.bf16 %v469
    %v526 = vunpack.c.h.s8.bf16 %v470
    %v527 = vunpack.c.h.s8.bf16 %v471
    %v528 = vunpack.c.l.s8.bf16 %v472
    %v529 = vunpack.c.l.s8.bf16 %v473
    %v530 = vunpack.c.l.s8.bf16 %v474
    %v531 = vunpack.c.l.s8.bf16 %v475
    %v532 = vunpack.c.h.s8.bf16 %v472
    %v533 = vunpack.c.h.s8.bf16 %v473
    %v534 = vunpack.c.h.s8.bf16 %v474
    %v535 = vunpack.c.h.s8.bf16 %v475
    %v536 = vunpack.c.l.s8.bf16 %v476
    %v537 = vunpack.c.l.s8.bf16 %v477
    %v538 = vunpack.c.l.s8.bf16 %v478
    %v539 = vunpack.c.l.s8.bf16 %v479
    %v540 = vunpack.c.h.s8.bf16 %v476
    %v541 = vunpack.c.h.s8.bf16 %v477
    %v542 = vunpack.c.h.s8.bf16 %v478
    %v543 = vunpack.c.h.s8.bf16 %v479
    %v546 = vrot.slane %v344, 1
    %v547 = vrot.slane %v345, 1
    %550 = vmatprep.subr.bf16.mxu0 %v509
    %551 = vmatpush1.bf16.msra.mxu0 %v508
    %552 = vmatprep.subr.bf16.mxu0 %v505
    %553 = vmatpush1.bf16.msra.mxu0 %v504
    %554 = vmatprep.subr.bf16.mxu0 %v501
    %555 = vmatpush1.bf16.msra.mxu0 %v500
    %556 = vmatprep.subr.bf16.mxu0 %v497
    %557 = vmatpush1.bf16.msra.mxu0 %v496
    %558 = vmatprep.subr.bf16.mxu0 %v493
    %559 = vmatpush1.bf16.msra.mxu0 %v492
    %560 = vmatprep.subr.bf16.mxu0 %v489
    %561 = vmatpush1.bf16.msra.mxu0 %v488
    %562 = vmatprep.subr.bf16.mxu0 %v485
    %563 = vmatpush1.bf16.msra.mxu0 %v484
    %564 = vmatprep.subr.bf16.mxu0 %v481
    %565 = vmatpush1.bf16.msra.mxu0 %v480
    %566 = vmatprep.subr.bf16.mxu0 %v541
    %567 = vmatpush2.bf16.msra.mxu0 %v540
    %568 = vmatprep.subr.bf16.mxu0 %v537
    %569 = vmatpush2.bf16.msra.mxu0 %v536
    %570 = vmatprep.subr.bf16.mxu0 %v533
    %571 = vmatpush2.bf16.msra.mxu0 %v532
    %572 = vmatprep.subr.bf16.mxu0 %v529
    %573 = vmatpush2.bf16.msra.mxu0 %v528
    %574 = vmatprep.subr.bf16.mxu0 %v525
    %575 = vmatpush2.bf16.msra.mxu0 %v524
    %576 = vmatprep.subr.bf16.mxu0 %v521
    %577 = vmatpush2.bf16.msra.mxu0 %v520
    %578 = vmatprep.subr.bf16.mxu0 %v517
    %579 = vmatpush2.bf16.msra.mxu0 %v516
    %580 = vmatprep.subr.bf16.mxu0 %v513
    %581 = vmatpush2.bf16.msra.mxu0 %v512
    %582 = vmatprep.mubr.bf16.mxu0 %v547
    %583 = vmatmul.mubr.bf16.gmra.mxu0 %v546
    %v584 = vpop.f32.mrf.mxu0
    %v585 = vadd.f32 0.0, %v584
    %v586 = vpop.f32.mrf.mxu0
    %v587 = vadd.f32 0.0, %v586
    %v588 = vpop.f32.mrf.mxu0
    %v589 = vpop.f32.mrf.mxu0
    %590 = vdwg.mxu0
    %591 = vmatprep.subr.bf16.mxu0 %v511
    %592 = vmatpush1.bf16.msra.mxu0 %v510
    %593 = vmatprep.subr.bf16.mxu0 %v507
    %594 = vmatpush1.bf16.msra.mxu0 %v506
    %595 = vmatprep.subr.bf16.mxu0 %v503
    %596 = vmatpush1.bf16.msra.mxu0 %v502
    %597 = vmatprep.subr.bf16.mxu0 %v499
    %598 = vmatpush1.bf16.msra.mxu0 %v498
    %599 = vmatprep.subr.bf16.mxu0 %v495
    %600 = vmatpush1.bf16.msra.mxu0 %v494
    %601 = vmatprep.subr.bf16.mxu0 %v491
    %602 = vmatpush1.bf16.msra.mxu0 %v490
    %603 = vmatprep.subr.bf16.mxu0 %v487
    %604 = vmatpush1.bf16.msra.mxu0 %v486
    %605 = vmatprep.subr.bf16.mxu0 %v483
    %606 = vmatpush1.bf16.msra.mxu0 %v482
    %607 = vmatprep.subr.bf16.mxu0 %v543
    %608 = vmatpush2.bf16.msra.mxu0 %v542
    %609 = vmatprep.subr.bf16.mxu0 %v539
    %610 = vmatpush2.bf16.msra.mxu0 %v538
    %611 = vmatprep.subr.bf16.mxu0 %v535
    %612 = vmatpush2.bf16.msra.mxu0 %v534
    %613 = vmatprep.subr.bf16.mxu0 %v531
    %614 = vmatpush2.bf16.msra.mxu0 %v530
    %615 = vmatprep.subr.bf16.mxu0 %v527
    %616 = vmatpush2.bf16.msra.mxu0 %v526
    %617 = vmatprep.subr.bf16.mxu0 %v523
    %618 = vmatpush2.bf16.msra.mxu0 %v522
    %619 = vmatprep.subr.bf16.mxu0 %v519
    %620 = vmatpush2.bf16.msra.mxu0 %v518
    %621 = vmatprep.subr.bf16.mxu0 %v515
    %622 = vmatpush2.bf16.msra.mxu0 %v514
    %623 = vmatprep.mubr.bf16.mxu0 %v547
    %624 = vmatmul.mubr.bf16.gmra.mxu0 %v546
    %v625 = vpop.f32.mrf.mxu0
    %v626 = vadd.f32 0.0, %v625
    %v627 = vpop.f32.mrf.mxu0
    %v628 = vadd.f32 0.0, %v627
    %v629 = vpop.f32.mrf.mxu0
    %v630 = vpop.f32.mrf.mxu0
    %631 = vdwg.mxu0
    %632 = vmatprep.subr.bf16.mxu0 %v412
    %633 = vmatpush1.bf16.msra.mxu0 %v411
    %634 = vmatprep.subr.bf16.mxu0 %v408
    %635 = vmatpush1.bf16.msra.mxu0 %v407
    %636 = vmatprep.subr.bf16.mxu0 %v404
    %637 = vmatpush1.bf16.msra.mxu0 %v403
    %638 = vmatprep.subr.bf16.mxu0 %v400
    %639 = vmatpush1.bf16.msra.mxu0 %v399
    %640 = vmatprep.subr.bf16.mxu0 %v396
    %641 = vmatpush1.bf16.msra.mxu0 %v395
    %642 = vmatprep.subr.bf16.mxu0 %v392
    %643 = vmatpush1.bf16.msra.mxu0 %v391
    %644 = vmatprep.subr.bf16.mxu0 %v388
    %645 = vmatpush1.bf16.msra.mxu0 %v387
    %646 = vmatprep.subr.bf16.mxu0 %v384
    %647 = vmatpush1.bf16.msra.mxu0 %v383
    %648 = vmatprep.subr.bf16.mxu0 %v444
    %649 = vmatpush2.bf16.msra.mxu0 %v443
    %650 = vmatprep.subr.bf16.mxu0 %v440
    %651 = vmatpush2.bf16.msra.mxu0 %v439
    %652 = vmatprep.subr.bf16.mxu0 %v436
    %653 = vmatpush2.bf16.msra.mxu0 %v435
    %654 = vmatprep.subr.bf16.mxu0 %v432
    %655 = vmatpush2.bf16.msra.mxu0 %v431
    %656 = vmatprep.subr.bf16.mxu0 %v428
    %657 = vmatpush2.bf16.msra.mxu0 %v427
    %658 = vmatprep.subr.bf16.mxu0 %v424
    %659 = vmatpush2.bf16.msra.mxu0 %v423
    %660 = vmatprep.subr.bf16.mxu0 %v420
    %661 = vmatpush2.bf16.msra.mxu0 %v419
    %662 = vmatprep.subr.bf16.mxu0 %v416
    %663 = vmatpush2.bf16.msra.mxu0 %v415
    %664 = vmatprep.mubr.bf16.mxu0 %v345
    %665 = vmatmul.mubr.bf16.gmra.mxu0 %v344
    %v666 = vpop.f32.mrf.mxu0
    %v667 = vadd.f32 %v585, %v666
    %v668 = vpop.f32.mrf.mxu0
    %v669 = vadd.f32 %v587, %v668
    %v670 = vpop.f32.mrf.mxu0
    %v671 = vpop.f32.mrf.mxu0
    %672 = vdwg.mxu0
    %673 = vmatprep.subr.bf16.mxu0 %v414
    %674 = vmatpush1.bf16.msra.mxu0 %v413
    %675 = vmatprep.subr.bf16.mxu0 %v410
    %676 = vmatpush1.bf16.msra.mxu0 %v409
    %677 = vmatprep.subr.bf16.mxu0 %v406
    %678 = vmatpush1.bf16.msra.mxu0 %v405
    %679 = vmatprep.subr.bf16.mxu0 %v402
    %680 = vmatpush1.bf16.msra.mxu0 %v401
    %681 = vmatprep.subr.bf16.mxu0 %v398
    %682 = vmatpush1.bf16.msra.mxu0 %v397
    %683 = vmatprep.subr.bf16.mxu0 %v394
    %684 = vmatpush1.bf16.msra.mxu0 %v393
    %685 = vmatprep.subr.bf16.mxu0 %v390
    %686 = vmatpush1.bf16.msra.mxu0 %v389
    %687 = vmatprep.subr.bf16.mxu0 %v386
    %688 = vmatpush1.bf16.msra.mxu0 %v385
    %689 = vmatprep.subr.bf16.mxu0 %v446
    %690 = vmatpush2.bf16.msra.mxu0 %v445
    %691 = vmatprep.subr.bf16.mxu0 %v442
    %692 = vmatpush2.bf16.msra.mxu0 %v441
    %693 = vmatprep.subr.bf16.mxu0 %v438
    %694 = vmatpush2.bf16.msra.mxu0 %v437
    %695 = vmatprep.subr.bf16.mxu0 %v434
    %696 = vmatpush2.bf16.msra.mxu0 %v433
    %697 = vmatprep.subr.bf16.mxu0 %v430
    %698 = vmatpush2.bf16.msra.mxu0 %v429
    %699 = vmatprep.subr.bf16.mxu0 %v426
    %700 = vmatpush2.bf16.msra.mxu0 %v425
    %701 = vmatprep.subr.bf16.mxu0 %v422
    %702 = vmatpush2.bf16.msra.mxu0 %v421
    %703 = vmatprep.subr.bf16.mxu0 %v418
    %704 = vmatpush2.bf16.msra.mxu0 %v417
    %705 = vmatprep.mubr.bf16.mxu0 %v345
    %706 = vmatmul.mubr.bf16.gmra.mxu0 %v344
    %v707 = vpop.f32.mrf.mxu0
    %v708 = vadd.f32 %v626, %v707
    %v709 = vpop.f32.mrf.mxu0
    %v710 = vadd.f32 %v628, %v709
    %v711 = vpop.f32.mrf.mxu0
    %v712 = vpop.f32.mrf.mxu0
    %713 = vdwg.mxu0
    %s714 = scalar_lea.vmem [#allocation2], 512
    %v715 = vld [vmem:[%s714] sm:$0xff]
    %v716 = vld [vmem:[%s714 + $0x8] sm:$0xff]
    %v717 = vld [vmem:[%s714 + $0x10] sm:$0xff]
    %v718 = vld [vmem:[%s714 + $0x18] sm:$0xff]
    %v719 = vld [vmem:[%s714 + $0x20] sm:$0xff]
    %v720 = vld [vmem:[%s714 + $0x28] sm:$0xff]
    %v721 = vld [vmem:[%s714 + $0x30] sm:$0xff]
    %v722 = vld [vmem:[%s714 + $0x38] sm:$0xff]
    %v723 = vld [vmem:[%s714 + $0x40] sm:$0xff]
    %v724 = vld [vmem:[%s714 + $0x48] sm:$0xff]
    %v725 = vld [vmem:[%s714 + $0x50] sm:$0xff]
    %v726 = vld [vmem:[%s714 + $0x58] sm:$0xff]
    %v727 = vld [vmem:[%s714 + $0x60] sm:$0xff]
    %v728 = vld [vmem:[%s714 + $0x68] sm:$0xff]
    %v729 = vld [vmem:[%s714 + $0x70] sm:$0xff]
    %v730 = vld [vmem:[%s714 + $0x78] sm:$0xff]
    %v731 = vld [vmem:[%s714 + $0x80] sm:$0xff]
    %v732 = vld [vmem:[%s714 + $0x88] sm:$0xff]
    %v733 = vld [vmem:[%s714 + $0x90] sm:$0xff]
    %v734 = vld [vmem:[%s714 + $0x98] sm:$0xff]
    %v735 = vld [vmem:[%s714 + $0xa0] sm:$0xff]
    %v736 = vld [vmem:[%s714 + $0xa8] sm:$0xff]
    %v737 = vld [vmem:[%s714 + $0xb0] sm:$0xff]
    %v738 = vld [vmem:[%s714 + $0xb8] sm:$0xff]
    %v739 = vld [vmem:[%s714 + $0xc0] sm:$0xff]
    %v740 = vld [vmem:[%s714 + $0xc8] sm:$0xff]
    %v741 = vld [vmem:[%s714 + $0xd0] sm:$0xff]
    %v742 = vld [vmem:[%s714 + $0xd8] sm:$0xff]
    %v743 = vld [vmem:[%s714 + $0xe0] sm:$0xff]
    %v744 = vld [vmem:[%s714 + $0xe8] sm:$0xff]
    %v745 = vld [vmem:[%s714 + $0xf0] sm:$0xff]
    %v746 = vld [vmem:[%s714 + $0xf8] sm:$0xff]
    %v747 = vunpack.c.l.s8.bf16 %v715
    %v748 = vunpack.c.l.s8.bf16 %v716
    %v749 = vunpack.c.l.s8.bf16 %v717
    %v750 = vunpack.c.l.s8.bf16 %v718
    %v751 = vunpack.c.h.s8.bf16 %v715
    %v752 = vunpack.c.h.s8.bf16 %v716
    %v753 = vunpack.c.h.s8.bf16 %v717
    %v754 = vunpack.c.h.s8.bf16 %v718
    %v755 = vunpack.c.l.s8.bf16 %v719
    %v756 = vunpack.c.l.s8.bf16 %v720
    %v757 = vunpack.c.l.s8.bf16 %v721
    %v758 = vunpack.c.l.s8.bf16 %v722
    %v759 = vunpack.c.h.s8.bf16 %v719
    %v760 = vunpack.c.h.s8.bf16 %v720
    %v761 = vunpack.c.h.s8.bf16 %v721
    %v762 = vunpack.c.h.s8.bf16 %v722
    %v763 = vunpack.c.l.s8.bf16 %v723
    %v764 = vunpack.c.l.s8.bf16 %v724
    %v765 = vunpack.c.l.s8.bf16 %v725
    %v766 = vunpack.c.l.s8.bf16 %v726
    %v767 = vunpack.c.h.s8.bf16 %v723
    %v768 = vunpack.c.h.s8.bf16 %v724
    %v769 = vunpack.c.h.s8.bf16 %v725
    %v770 = vunpack.c.h.s8.bf16 %v726
    %v771 = vunpack.c.l.s8.bf16 %v727
    %v772 = vunpack.c.l.s8.bf16 %v728
    %v773 = vunpack.c.l.s8.bf16 %v729
    %v774 = vunpack.c.l.s8.bf16 %v730
    %v775 = vunpack.c.h.s8.bf16 %v727
    %v776 = vunpack.c.h.s8.bf16 %v728
    %v777 = vunpack.c.h.s8.bf16 %v729
    %v778 = vunpack.c.h.s8.bf16 %v730
    %v779 = vunpack.c.l.s8.bf16 %v731
    %v780 = vunpack.c.l.s8.bf16 %v732
    %v781 = vunpack.c.l.s8.bf16 %v733
    %v782 = vunpack.c.l.s8.bf16 %v734
    %v783 = vunpack.c.h.s8.bf16 %v731
    %v784 = vunpack.c.h.s8.bf16 %v732
    %v785 = vunpack.c.h.s8.bf16 %v733
    %v786 = vunpack.c.h.s8.bf16 %v734
    %v787 = vunpack.c.l.s8.bf16 %v735
    %v788 = vunpack.c.l.s8.bf16 %v736
    %v789 = vunpack.c.l.s8.bf16 %v737
    %v790 = vunpack.c.l.s8.bf16 %v738
    %v791 = vunpack.c.h.s8.bf16 %v735
    %v792 = vunpack.c.h.s8.bf16 %v736
    %v793 = vunpack.c.h.s8.bf16 %v737
    %v794 = vunpack.c.h.s8.bf16 %v738
    %v795 = vunpack.c.l.s8.bf16 %v739
    %v796 = vunpack.c.l.s8.bf16 %v740
    %v797 = vunpack.c.l.s8.bf16 %v741
    %v798 = vunpack.c.l.s8.bf16 %v742
    %v799 = vunpack.c.h.s8.bf16 %v739
    %v800 = vunpack.c.h.s8.bf16 %v740
    %v801 = vunpack.c.h.s8.bf16 %v741
    %v802 = vunpack.c.h.s8.bf16 %v742
    %v803 = vunpack.c.l.s8.bf16 %v743
    %v804 = vunpack.c.l.s8.bf16 %v744
    %v805 = vunpack.c.l.s8.bf16 %v745
    %v806 = vunpack.c.l.s8.bf16 %v746
    %v807 = vunpack.c.h.s8.bf16 %v743
    %v808 = vunpack.c.h.s8.bf16 %v744
    %v809 = vunpack.c.h.s8.bf16 %v745
    %v810 = vunpack.c.h.s8.bf16 %v746
    %v811 = vrot.slane %v344, 2
    %v812 = vrot.slane %v345, 2
    %815 = vmatprep.subr.bf16.mxu0 %v776
    %816 = vmatpush1.bf16.msra.mxu0 %v775
    %817 = vmatprep.subr.bf16.mxu0 %v772
    %818 = vmatpush1.bf16.msra.mxu0 %v771
    %819 = vmatprep.subr.bf16.mxu0 %v768
    %820 = vmatpush1.bf16.msra.mxu0 %v767
    %821 = vmatprep.subr.bf16.mxu0 %v764
    %822 = vmatpush1.bf16.msra.mxu0 %v763
    %823 = vmatprep.subr.bf16.mxu0 %v760
    %824 = vmatpush1.bf16.msra.mxu0 %v759
    %825 = vmatprep.subr.bf16.mxu0 %v756
    %826 = vmatpush1.bf16.msra.mxu0 %v755
    %827 = vmatprep.subr.bf16.mxu0 %v752
    %828 = vmatpush1.bf16.msra.mxu0 %v751
    %829 = vmatprep.subr.bf16.mxu0 %v748
    %830 = vmatpush1.bf16.msra.mxu0 %v747
    %831 = vmatprep.subr.bf16.mxu0 %v808
    %832 = vmatpush2.bf16.msra.mxu0 %v807
    %833 = vmatprep.subr.bf16.mxu0 %v804
    %834 = vmatpush2.bf16.msra.mxu0 %v803
    %835 = vmatprep.subr.bf16.mxu0 %v800
    %836 = vmatpush2.bf16.msra.mxu0 %v799
    %837 = vmatprep.subr.bf16.mxu0 %v796
    %838 = vmatpush2.bf16.msra.mxu0 %v795
    %839 = vmatprep.subr.bf16.mxu0 %v792
    %840 = vmatpush2.bf16.msra.mxu0 %v791
    %841 = vmatprep.subr.bf16.mxu0 %v788
    %842 = vmatpush2.bf16.msra.mxu0 %v787
    %843 = vmatprep.subr.bf16.mxu0 %v784
    %844 = vmatpush2.bf16.msra.mxu0 %v783
    %845 = vmatprep.subr.bf16.mxu0 %v780
    %846 = vmatpush2.bf16.msra.mxu0 %v779
    %847 = vmatprep.mubr.bf16.mxu0 %v812
    %848 = vmatmul.mubr.bf16.gmra.mxu0 %v811
    %v849 = vpop.f32.mrf.mxu0
    %v850 = vadd.f32 0.0, %v849
    %v851 = vpop.f32.mrf.mxu0
    %v852 = vadd.f32 0.0, %v851
    %v853 = vpop.f32.mrf.mxu0
    %v854 = vpop.f32.mrf.mxu0
    %855 = vdwg.mxu0
    %856 = vmatprep.subr.bf16.mxu0 %v778
    %857 = vmatpush1.bf16.msra.mxu0 %v777
    %858 = vmatprep.subr.bf16.mxu0 %v774
    %859 = vmatpush1.bf16.msra.mxu0 %v773
    %860 = vmatprep.subr.bf16.mxu0 %v770
    %861 = vmatpush1.bf16.msra.mxu0 %v769
    %862 = vmatprep.subr.bf16.mxu0 %v766
    %863 = vmatpush1.bf16.msra.mxu0 %v765
    %864 = vmatprep.subr.bf16.mxu0 %v762
    %865 = vmatpush1.bf16.msra.mxu0 %v761
    %866 = vmatprep.subr.bf16.mxu0 %v758
    %867 = vmatpush1.bf16.msra.mxu0 %v757
    %868 = vmatprep.subr.bf16.mxu0 %v754
    %869 = vmatpush1.bf16.msra.mxu0 %v753
    %870 = vmatprep.subr.bf16.mxu0 %v750
    %871 = vmatpush1.bf16.msra.mxu0 %v749
    %872 = vmatprep.subr.bf16.mxu0 %v810
    %873 = vmatpush2.bf16.msra.mxu0 %v809
    %874 = vmatprep.subr.bf16.mxu0 %v806
    %875 = vmatpush2.bf16.msra.mxu0 %v805
    %876 = vmatprep.subr.bf16.mxu0 %v802
    %877 = vmatpush2.bf16.msra.mxu0 %v801
    %878 = vmatprep.subr.bf16.mxu0 %v798
    %879 = vmatpush2.bf16.msra.mxu0 %v797
    %880 = vmatprep.subr.bf16.mxu0 %v794
    %881 = vmatpush2.bf16.msra.mxu0 %v793
    %882 = vmatprep.subr.bf16.mxu0 %v790
    %883 = vmatpush2.bf16.msra.mxu0 %v789
    %884 = vmatprep.subr.bf16.mxu0 %v786
    %885 = vmatpush2.bf16.msra.mxu0 %v785
    %886 = vmatprep.subr.bf16.mxu0 %v782
    %887 = vmatpush2.bf16.msra.mxu0 %v781
    %888 = vmatprep.mubr.bf16.mxu0 %v812
    %889 = vmatmul.mubr.bf16.gmra.mxu0 %v811
    %v890 = vpop.f32.mrf.mxu0
    %v891 = vadd.f32 0.0, %v890
    %v892 = vpop.f32.mrf.mxu0
    %v893 = vadd.f32 0.0, %v892
    %v894 = vpop.f32.mrf.mxu0
    %v895 = vpop.f32.mrf.mxu0
    %896 = vdwg.mxu0
    %v897 = vadd.f32 %v667, %v850
    %v898 = vadd.f32 %v669, %v852
    %v899 = vadd.f32 %v708, %v891
    %v900 = vadd.f32 %v710, %v893
    %s901 = scalar_lea.vmem [#allocation2], 768
    %v902 = vld [vmem:[%s901] sm:$0xff]
    %v903 = vld [vmem:[%s901 + $0x8] sm:$0xff]
    %v904 = vld [vmem:[%s901 + $0x10] sm:$0xff]
    %v905 = vld [vmem:[%s901 + $0x18] sm:$0xff]
    %v906 = vld [vmem:[%s901 + $0x20] sm:$0xff]
    %v907 = vld [vmem:[%s901 + $0x28] sm:$0xff]
    %v908 = vld [vmem:[%s901 + $0x30] sm:$0xff]
    %v909 = vld [vmem:[%s901 + $0x38] sm:$0xff]
    %v910 = vld [vmem:[%s901 + $0x40] sm:$0xff]
    %v911 = vld [vmem:[%s901 + $0x48] sm:$0xff]
    %v912 = vld [vmem:[%s901 + $0x50] sm:$0xff]
    %v913 = vld [vmem:[%s901 + $0x58] sm:$0xff]
    %v914 = vld [vmem:[%s901 + $0x60] sm:$0xff]
    %v915 = vld [vmem:[%s901 + $0x68] sm:$0xff]
    %v916 = vld [vmem:[%s901 + $0x70] sm:$0xff]
    %v917 = vld [vmem:[%s901 + $0x78] sm:$0xff]
    %v918 = vld [vmem:[%s901 + $0x80] sm:$0xff]
    %v919 = vld [vmem:[%s901 + $0x88] sm:$0xff]
    %v920 = vld [vmem:[%s901 + $0x90] sm:$0xff]
    %v921 = vld [vmem:[%s901 + $0x98] sm:$0xff]
    %v922 = vld [vmem:[%s901 + $0xa0] sm:$0xff]
    %v923 = vld [vmem:[%s901 + $0xa8] sm:$0xff]
    %v924 = vld [vmem:[%s901 + $0xb0] sm:$0xff]
    %v925 = vld [vmem:[%s901 + $0xb8] sm:$0xff]
    %v926 = vld [vmem:[%s901 + $0xc0] sm:$0xff]
    %v927 = vld [vmem:[%s901 + $0xc8] sm:$0xff]
    %v928 = vld [vmem:[%s901 + $0xd0] sm:$0xff]
    %v929 = vld [vmem:[%s901 + $0xd8] sm:$0xff]
    %v930 = vld [vmem:[%s901 + $0xe0] sm:$0xff]
    %v931 = vld [vmem:[%s901 + $0xe8] sm:$0xff]
    %v932 = vld [vmem:[%s901 + $0xf0] sm:$0xff]
    %v933 = vld [vmem:[%s901 + $0xf8] sm:$0xff]
    %v934 = vunpack.c.l.s8.bf16 %v902
    %v935 = vunpack.c.l.s8.bf16 %v903
    %v936 = vunpack.c.l.s8.bf16 %v904
    %v937 = vunpack.c.l.s8.bf16 %v905
    %v938 = vunpack.c.h.s8.bf16 %v902
    %v939 = vunpack.c.h.s8.bf16 %v903
    %v940 = vunpack.c.h.s8.bf16 %v904
    %v941 = vunpack.c.h.s8.bf16 %v905
    %v942 = vunpack.c.l.s8.bf16 %v906
    %v943 = vunpack.c.l.s8.bf16 %v907
    %v944 = vunpack.c.l.s8.bf16 %v908
    %v945 = vunpack.c.l.s8.bf16 %v909
    %v946 = vunpack.c.h.s8.bf16 %v906
    %v947 = vunpack.c.h.s8.bf16 %v907
    %v948 = vunpack.c.h.s8.bf16 %v908
    %v949 = vunpack.c.h.s8.bf16 %v909
    %v950 = vunpack.c.l.s8.bf16 %v910
    %v951 = vunpack.c.l.s8.bf16 %v911
    %v952 = vunpack.c.l.s8.bf16 %v912
    %v953 = vunpack.c.l.s8.bf16 %v913
    %v954 = vunpack.c.h.s8.bf16 %v910
    %v955 = vunpack.c.h.s8.bf16 %v911
    %v956 = vunpack.c.h.s8.bf16 %v912
    %v957 = vunpack.c.h.s8.bf16 %v913
    %v958 = vunpack.c.l.s8.bf16 %v914
    %v959 = vunpack.c.l.s8.bf16 %v915
    %v960 = vunpack.c.l.s8.bf16 %v916
    %v961 = vunpack.c.l.s8.bf16 %v917
    %v962 = vunpack.c.h.s8.bf16 %v914
    %v963 = vunpack.c.h.s8.bf16 %v915
    %v964 = vunpack.c.h.s8.bf16 %v916
    %v965 = vunpack.c.h.s8.bf16 %v917
    %v966 = vunpack.c.l.s8.bf16 %v918
    %v967 = vunpack.c.l.s8.bf16 %v919
    %v968 = vunpack.c.l.s8.bf16 %v920
    %v969 = vunpack.c.l.s8.bf16 %v921
    %v970 = vunpack.c.h.s8.bf16 %v918
    %v971 = vunpack.c.h.s8.bf16 %v919
    %v972 = vunpack.c.h.s8.bf16 %v920
    %v973 = vunpack.c.h.s8.bf16 %v921
    %v974 = vunpack.c.l.s8.bf16 %v922
    %v975 = vunpack.c.l.s8.bf16 %v923
    %v976 = vunpack.c.l.s8.bf16 %v924
    %v977 = vunpack.c.l.s8.bf16 %v925
    %v978 = vunpack.c.h.s8.bf16 %v922
    %v979 = vunpack.c.h.s8.bf16 %v923
    %v980 = vunpack.c.h.s8.bf16 %v924
    %v981 = vunpack.c.h.s8.bf16 %v925
    %v982 = vunpack.c.l.s8.bf16 %v926
    %v983 = vunpack.c.l.s8.bf16 %v927
    %v984 = vunpack.c.l.s8.bf16 %v928
    %v985 = vunpack.c.l.s8.bf16 %v929
    %v986 = vunpack.c.h.s8.bf16 %v926
    %v987 = vunpack.c.h.s8.bf16 %v927
    %v988 = vunpack.c.h.s8.bf16 %v928
    %v989 = vunpack.c.h.s8.bf16 %v929
    %v990 = vunpack.c.l.s8.bf16 %v930
    %v991 = vunpack.c.l.s8.bf16 %v931
    %v992 = vunpack.c.l.s8.bf16 %v932
    %v993 = vunpack.c.l.s8.bf16 %v933
    %v994 = vunpack.c.h.s8.bf16 %v930
    %v995 = vunpack.c.h.s8.bf16 %v931
    %v996 = vunpack.c.h.s8.bf16 %v932
    %v997 = vunpack.c.h.s8.bf16 %v933
    %v998 = vrot.slane %v344, 3
    %v999 = vrot.slane %v345, 3
    %1002 = vmatprep.subr.bf16.mxu0 %v963
    %1003 = vmatpush1.bf16.msra.mxu0 %v962
    %1004 = vmatprep.subr.bf16.mxu0 %v959
    %1005 = vmatpush1.bf16.msra.mxu0 %v958
    %1006 = vmatprep.subr.bf16.mxu0 %v955
    %1007 = vmatpush1.bf16.msra.mxu0 %v954
    %1008 = vmatprep.subr.bf16.mxu0 %v951
    %1009 = vmatpush1.bf16.msra.mxu0 %v950
    %1010 = vmatprep.subr.bf16.mxu0 %v947
    %1011 = vmatpush1.bf16.msra.mxu0 %v946
    %1012 = vmatprep.subr.bf16.mxu0 %v943
    %1013 = vmatpush1.bf16.msra.mxu0 %v942
    %1014 = vmatprep.subr.bf16.mxu0 %v939
    %1015 = vmatpush1.bf16.msra.mxu0 %v938
    %1016 = vmatprep.subr.bf16.mxu0 %v935
    %1017 = vmatpush1.bf16.msra.mxu0 %v934
    %1018 = vmatprep.subr.bf16.mxu0 %v995
    %1019 = vmatpush2.bf16.msra.mxu0 %v994
    %1020 = vmatprep.subr.bf16.mxu0 %v991
    %1021 = vmatpush2.bf16.msra.mxu0 %v990
    %1022 = vmatprep.subr.bf16.mxu0 %v987
    %1023 = vmatpush2.bf16.msra.mxu0 %v986
    %1024 = vmatprep.subr.bf16.mxu0 %v983
    %1025 = vmatpush2.bf16.msra.mxu0 %v982
    %1026 = vmatprep.subr.bf16.mxu0 %v979
    %1027 = vmatpush2.bf16.msra.mxu0 %v978
    %1028 = vmatprep.subr.bf16.mxu0 %v975
    %1029 = vmatpush2.bf16.msra.mxu0 %v974
    %1030 = vmatprep.subr.bf16.mxu0 %v971
    %1031 = vmatpush2.bf16.msra.mxu0 %v970
    %1032 = vmatprep.subr.bf16.mxu0 %v967
    %1033 = vmatpush2.bf16.msra.mxu0 %v966
    %1034 = vmatprep.mubr.bf16.mxu0 %v999
    %1035 = vmatmul.mubr.bf16.gmra.mxu0 %v998
    %v1036 = vpop.f32.mrf.mxu0
    %v1037 = vadd.f32 0.0, %v1036
    %v1038 = vpop.f32.mrf.mxu0
    %v1039 = vadd.f32 0.0, %v1038
    %v1040 = vpop.f32.mrf.mxu0
    %v1041 = vpop.f32.mrf.mxu0
    %1042 = vdwg.mxu0
    %1043 = vmatprep.subr.bf16.mxu0 %v965
    %1044 = vmatpush1.bf16.msra.mxu0 %v964
    %1045 = vmatprep.subr.bf16.mxu0 %v961
    %1046 = vmatpush1.bf16.msra.mxu0 %v960
    %1047 = vmatprep.subr.bf16.mxu0 %v957
    %1048 = vmatpush1.bf16.msra.mxu0 %v956
    %1049 = vmatprep.subr.bf16.mxu0 %v953
    %1050 = vmatpush1.bf16.msra.mxu0 %v952
    %1051 = vmatprep.subr.bf16.mxu0 %v949
    %1052 = vmatpush1.bf16.msra.mxu0 %v948
    %1053 = vmatprep.subr.bf16.mxu0 %v945
    %1054 = vmatpush1.bf16.msra.mxu0 %v944
    %1055 = vmatprep.subr.bf16.mxu0 %v941
    %1056 = vmatpush1.bf16.msra.mxu0 %v940
    %1057 = vmatprep.subr.bf16.mxu0 %v937
    %1058 = vmatpush1.bf16.msra.mxu0 %v936
    %1059 = vmatprep.subr.bf16.mxu0 %v997
    %1060 = vmatpush2.bf16.msra.mxu0 %v996
    %1061 = vmatprep.subr.bf16.mxu0 %v993
    %1062 = vmatpush2.bf16.msra.mxu0 %v992
    %1063 = vmatprep.subr.bf16.mxu0 %v989
    %1064 = vmatpush2.bf16.msra.mxu0 %v988
    %1065 = vmatprep.subr.bf16.mxu0 %v985
    %1066 = vmatpush2.bf16.msra.mxu0 %v984
    %1067 = vmatprep.subr.bf16.mxu0 %v981
    %1068 = vmatpush2.bf16.msra.mxu0 %v980
    %1069 = vmatprep.subr.bf16.mxu0 %v977
    %1070 = vmatpush2.bf16.msra.mxu0 %v976
    %1071 = vmatprep.subr.bf16.mxu0 %v973
    %1072 = vmatpush2.bf16.msra.mxu0 %v972
    %1073 = vmatprep.subr.bf16.mxu0 %v969
    %1074 = vmatpush2.bf16.msra.mxu0 %v968
    %1075 = vmatprep.mubr.bf16.mxu0 %v999
    %1076 = vmatmul.mubr.bf16.gmra.mxu0 %v998
    %v1077 = vpop.f32.mrf.mxu0
    %v1078 = vadd.f32 0.0, %v1077
    %v1079 = vpop.f32.mrf.mxu0
    %v1080 = vadd.f32 0.0, %v1079
    %v1081 = vpop.f32.mrf.mxu0
    %v1082 = vpop.f32.mrf.mxu0
    %1083 = vdwg.mxu0
    %v1084 = vadd.f32 %v897, %v1037
    %v1085 = vadd.f32 %v898, %v1039
    %v1086 = vadd.f32 %v899, %v1078
    %v1087 = vadd.f32 %v900, %v1080
    %v1088 = vld [vmem:[%s5] sm:$0xf]
    %v1090 = vlaneseq
    %v1091 = vshrl.u32 %v1090, 7
    %v1092 = vsub.s32 0, %v1091
    %v1093 = vrot.slane %v1088, %v1092
    %v1094 = vlaneseq
    %v1095 = vshrl.u32 %v1094, 7
    %v1096 = vsub.s32 1, %v1095
    %v1097 = vrot.slane %v1088, %v1096
    %v1098 = vlaneseq
    %v1099 = vshrl.u32 %v1098, 7
    %v1100 = vsub.s32 2, %v1099
    %v1101 = vrot.slane %v1088, %v1100
    %v1102 = vlaneseq
    %v1103 = vshrl.u32 %v1102, 7
    %v1104 = vsub.s32 3, %v1103
    %v1105 = vrot.slane %v1088, %v1104
    %v1110 = vmul.f32 %v1084, %v1093
    %v1111 = vmul.f32 %v1085, %v1097
    %v1112 = vmul.f32 %v1086, %v1101
    %v1113 = vmul.f32 %v1087, %v1105
    %v1114 = vld [vmem:[%s6] sm:$0xf]
    %v1116 = vlaneseq
    %v1117 = vshrl.u32 %v1116, 7
    %v1118 = vsub.s32 0, %v1117
    %v1119 = vrot.slane %v1114, %v1118
    %v1120 = vlaneseq
    %v1121 = vshrl.u32 %v1120, 7
    %v1122 = vsub.s32 1, %v1121
    %v1123 = vrot.slane %v1114, %v1122
    %v1124 = vlaneseq
    %v1125 = vshrl.u32 %v1124, 7
    %v1126 = vsub.s32 2, %v1125
    %v1127 = vrot.slane %v1114, %v1126
    %v1128 = vlaneseq
    %v1129 = vshrl.u32 %v1128, 7
    %v1130 = vsub.s32 3, %v1129
    %v1131 = vrot.slane %v1114, %v1130
    %v1136 = vadd.f32 %v1110, %v1119
    %v1137 = vadd.f32 %v1111, %v1123
    %v1138 = vadd.f32 %v1112, %v1127
    %v1139 = vadd.f32 %v1113, %v1131
    %v1140 = vmax.f32 %v1136, 0.0
    %v1141 = vmax.f32 %v1137, 0.0
    %v1142 = vmax.f32 %v1138, 0.0
    %v1143 = vmax.f32 %v1139, 0.0
    %v1144 = vld [vmem:[%s7] sm:$0xff]
    %v1146 = vlaneseq
    %v1147 = vshrl.u32 %v1146, 7
    %v1148 = vsub.s32 0, %v1147
    %v1149 = vrot.slane %v1144, %v1148
    %v1150 = vlaneseq
    %v1151 = vshrl.u32 %v1150, 7
    %v1152 = vsub.s32 2, %v1151
    %v1153 = vrot.slane %v1144, %v1152
    %v1154 = vlaneseq
    %v1155 = vshrl.u32 %v1154, 7
    %v1156 = vsub.s32 4, %v1155
    %v1157 = vrot.slane %v1144, %v1156
    %v1158 = vlaneseq
    %v1159 = vshrl.u32 %v1158, 7
    %v1160 = vsub.s32 6, %v1159
    %v1161 = vrot.slane %v1144, %v1160
    %v1166 = vlaneseq
    %v1167 = vshrl.u32 %v1166, 7
    %v1168 = vsub.s32 0, %v1167
    %v1169 = vrot.slane %v1149, %v1168
    %v1170 = vlaneseq
    %v1171 = vshrl.u32 %v1170, 7
    %v1172 = vsub.s32 0, %v1171
    %v1173 = vrot.slane %v1153, %v1172
    %v1174 = vlaneseq
    %v1175 = vshrl.u32 %v1174, 7
    %v1176 = vsub.s32 0, %v1175
    %v1177 = vrot.slane %v1157, %v1176
    %v1178 = vlaneseq
    %v1179 = vshrl.u32 %v1178, 7
    %v1180 = vsub.s32 0, %v1179
    %v1181 = vrot.slane %v1161, %v1180
    %v1182 = vmul.f32 %v1140, %v1169
    %v1183 = vmul.f32 %v1141, %v1173
    %v1184 = vmul.f32 %v1142, %v1177
    %v1185 = vmul.f32 %v1143, %v1181
    %vm1186 = vcmask 1041408
    %v1187 = vsel %vm1186, %v1182, 0.0
    %v1188 = vsel %vm1186, %v1183, 0.0
    %v1189 = vadd.f32 %v1187, %v1188
    %v1190 = vsel %vm1186, %v1184, 0.0
    %v1191 = vadd.f32 %v1189, %v1190
    %v1192 = vsel %vm1186, %v1185, 0.0
    %v1193 = vadd.f32 %v1191, %v1192
    %1194 = vadd.xlane.f32.xlu0 %v1193
    %v1195 = vpop.xlane.xlu0 %1194
    %v1196 = vlaneseq
    %v1197 = vshrl.u32 %v1196, 7
    %v1198 = vsub.s32 1, %v1197
    %v1199 = vrot.slane %v1144, %v1198
    %v1200 = vlaneseq
    %v1201 = vshrl.u32 %v1200, 7
    %v1202 = vsub.s32 3, %v1201
    %v1203 = vrot.slane %v1144, %v1202
    %v1204 = vlaneseq
    %v1205 = vshrl.u32 %v1204, 7
    %v1206 = vsub.s32 5, %v1205
    %v1207 = vrot.slane %v1144, %v1206
    %v1208 = vlaneseq
    %v1209 = vshrl.u32 %v1208, 7
    %v1210 = vsub.s32 7, %v1209
    %v1211 = vrot.slane %v1144, %v1210
    %v1216 = vlaneseq
    %v1217 = vshrl.u32 %v1216, 7
    %v1218 = vsub.s32 1, %v1217
    %v1219 = vrot.slane %v1199, %v1218
    %v1220 = vlaneseq
    %v1221 = vshrl.u32 %v1220, 7
    %v1222 = vsub.s32 1, %v1221
    %v1223 = vrot.slane %v1203, %v1222
    %v1224 = vlaneseq
    %v1225 = vshrl.u32 %v1224, 7
    %v1226 = vsub.s32 1, %v1225
    %v1227 = vrot.slane %v1207, %v1226
    %v1228 = vlaneseq
    %v1229 = vshrl.u32 %v1228, 7
    %v1230 = vsub.s32 1, %v1229
    %v1231 = vrot.slane %v1211, %v1230
    %v1232 = vmul.f32 %v1140, %v1219
    %v1233 = vmul.f32 %v1141, %v1223
    %v1234 = vmul.f32 %v1142, %v1227
    %v1235 = vmul.f32 %v1143, %v1231
    %v1236 = vsel %vm1186, %v1232, 0.0
    %v1237 = vsel %vm1186, %v1233, 0.0
    %v1238 = vadd.f32 %v1236, %v1237
    %v1239 = vsel %vm1186, %v1234, 0.0
    %v1240 = vadd.f32 %v1238, %v1239
    %v1241 = vsel %vm1186, %v1235, 0.0
    %v1242 = vadd.f32 %v1240, %v1241
    %1243 = vadd.xlane.f32.xlu0 %v1242
    %v1244 = vpop.xlane.xlu0 %1243
    %v1245 = vsel %vm125, %v1195, %v1244
    %v1246 = vld [vmem:[%s8] sm:$0x1]
    %v1248 = vlaneseq
    %v1249 = vshrl.u32 %v1248, 7
    %v1250 = vsub.s32 0, %v1249
    %v1251 = vrot.slane %v1246, %v1250
    %v1253 = vadd.f32 %v1245, %v1251
    %vm1254 = vcmask 9216
    %v1255 = vsel %vm1254, %v1253, -inf
    %1256 = vmax.xlane.f32.xlu0 %v1255
    %v1257 = vpop.xlane.xlu0 %1256
    %v1258 = vsub.f32 %v1253, %v1257
    %v1259 = vmul.f32 %v1258, 1.442695
    %v1260 = vpow.pop %v1259
    %v1261 = vsel %vm1254, %v1260, 0.0
    %1262 = vadd.xlane.f32.xlu0 %v1261
    %v1263 = vpop.xlane.xlu0 %1262
    %v1264 = vrcp.pop %v1263
    %v1265 = vmul.f32 %v1260, %v1264
    %1266 = vst.msk [vmem:[#allocation4] sm:$0x3] %vm1254, %v1265
    // Predicated region
    $region38: #{cnn_forward.1} parent=1 // pred_check
      _
    $region39: #{cnn_forward.1} parent=1 // pred_check_branch
      %1268 = sbr.rel (0) target = $region41
    $region40: #{cnn_forward.1} parent=1 // pred_region
      %s1270 = ssub.s32 32, 32
      %1271 = vsyncadd [#allocation5], %s1270
      %s1273 = sshll.u32 [#allocation4], 4
      %s1274 = int_to_ptr.vmem [resolvable:$true] %s1273
      %1276 = dma.vmem_to_hbm [thread:$0]  %s1274, 32, %s9, [#allocation5]
    $region41: #{cnn_forward.1} parent=1 // pred_fallthru
      _
    // Predicated region
    $region42: #{cnn_forward.1} parent=1 // pred_check
      _
    $region43: #{cnn_forward.1} parent=1 // pred_check_branch
      %1278 = sbr.rel (0) target = $region45
    $region44: #{cnn_forward.1} parent=1 // pred_region
      %1279 = dma.done [#allocation5], 32
    $region45: #{cnn_forward.1} parent=1 // pred_fallthru
      _
    %1280 = vsyncpa [#allocation5], 1
  %1281 = vsyncmov [#allocation3]
  %s1282 = vpop.sfrf %1281
  %p1283 = scmp.eq.s32.totalorder %s1282, 0
  %p1284 = pneg %p1283
  %1286 = shalt.err (%p1284)

</llo_original>
